<compile_context>
chip_gen: v6e
topology: v6e:2x2x1
jax: 0.10.0
libtpu: 0.0.40
codegen_flags: <defaults>
</compile_context>

<pallas_src>
import functools
import numpy as np

import jax
import jax.numpy as jnp
from jax import lax
from jax.experimental import pallas as pl
from jax.experimental.pallas import tpu as pltpu


_NEG_BIG = -1e30
_TM_PUSH = 256          # push-loss row-block size (multiple of 8, MXU friendly)


def _round_up(x, m):
    return ((int(x) + m - 1) // m) * m


def _slab_rows(n_elems):
    rows = (max(int(n_elems), 1) + 127) // 128
    return max(8, _round_up(rows, 8))


def _to_slab(flat, rows, fill=0.0):
    flat = jnp.asarray(flat).astype(jnp.float32)
    n = flat.shape[0]
    return jnp.pad(flat, (0, rows * 128 - n), constant_values=fill).reshape(rows, 128)


# ----------------------------------------------------------------------------
# Fused loss kernel: all five scalar losses in one pallas_call.
# Grid = (n_push_blocks,) over 256-row blocks of the matched embeddings; all other
# losses are computed once at grid step 0 (their inputs use constant index maps and
# stay resident in VMEM).
# ----------------------------------------------------------------------------
def _fused_loss_kernel(ent_logits_ref,   # [B, Cp1p, Qp] VMEM f32, lane-dense (classes on sublanes)
                       ent_tcls_ref,     # [B, 1,    Qp] VMEM int32 target class (no-object = C)
                       tgt_len_ref,      # [B, 1, 1]     VMEM f32 #gt entities per batch
                       pos_pred_ref,     # [Rp, 128]     VMEM f32 matched pred pos (zero padded)
                       pos_tgt_ref,      # [Rp, 128]     VMEM f32 matched target pos (zero padded)
                       rel_x_ref,        # [Rr, 128]     VMEM f32 rel logits (padded with -30)
                       rel_y_ref,        # [Rr, 128]     VMEM f32 rel multi-hot targets (pad 0)
                       emb_ref,          # [Mp, D]       VMEM bf16 matched id-emb (pad rows = 0)
                       sqcol_ref,        # [1, Mp]       VMEM f32 ||e_j||^2 in lane layout
                       counts_ref,       # [1]           SMEM int32: n_matched entities
                       denoms_ref,       # [1]           SMEM f32:   num_span (total gt entities)
                       out_ref,          # [8]           SMEM f32 outputs
                       push_acc_ref,     # [1]           SMEM f32 scratch (push-loss accumulator)
                       *, num_classes, eos_coef, alpha, gamma, margin, real_q, tm):
    f32 = jnp.float32
    blk = pl.program_id(0)
    n_blk = pl.num_programs(0)
    n_valid = counts_ref[0]

    # ---------------- step 0: every loss except the (tiled) push loss ----------------
    @pl.when(blk == 0)
    def _step0():
        # --- entity classification: class-weighted CE, lane-dense [B, Cp1p, Qp] layout ---
        lg = ent_logits_ref[...]
        b, cp, qp = lg.shape
        row_iota = lax.broadcasted_iota(jnp.int32, (b, cp, qp), 1)
        tcls = ent_tcls_ref[...]                                           # [B, 1, Qp]
        q_valid = (lax.broadcasted_iota(jnp.int32, (b, 1, qp), 2)
                   < real_q).astype(f32)                                   # static pad-col mask
        onehot = (row_iota == tcls).astype(f32)
        mx = jnp.max(lg, axis=1, keepdims=True)
        lse = jnp.log(jnp.sum(jnp.exp(lg - mx), axis=1, keepdims=True)) + mx
        logit_t = jnp.sum(onehot * lg, axis=1, keepdims=True)
        w_t = jnp.where(tcls == num_classes, f32(eos_coef), f32(1.0)) * q_valid
        out_ref[0] = jnp.sum(w_t * (lse - logit_t)) / jnp.sum(w_t)

        # --- cardinality error (reuses the logits already resident in vregs) ---
        max_fg = jnp.max(jnp.where(row_iota < num_classes, lg, f32(_NEG_BIG)),
                         axis=1, keepdims=True)                            # [B, 1, Qp]
        no_obj = jnp.sum(jnp.where(row_iota == num_classes, lg, f32(0.0)),
                         axis=1, keepdims=True)                            # [B, 1, Qp]
        non_empty = jnp.where(max_fg >= no_obj, q_valid, f32(0.0))
        card = jnp.sum(non_empty, axis=2, keepdims=True)                   # [B, 1, 1]
        out_ref[1] = jnp.mean(jnp.abs(card - tgt_len_ref[...]))

        # --- L1 position loss (lane-dense slab; zero padding contributes 0) ---
        l1 = jnp.sum(jnp.abs(pos_pred_ref[...] - pos_tgt_ref[...]))
        out_ref[2] = l1 / jnp.maximum(denoms_ref[0], f32(1.0))

        # --- relation sigmoid-focal BCE (reduction='sum') ---
        # Padding is x=-30 / y=0, so padded elements contribute ~e-13 * focal ~ 0:
        # no in-kernel validity mask is needed.
        x = rel_x_ref[...]
        y = rel_y_ref[...]
        p = pl.reciprocal(1.0 + jnp.exp(-x), approx=True)                  # EUP slot
        pt = (1.0 - p) * y + p * (1.0 - y)
        focal_w = (alpha * y + (1.0 - alpha) * (1.0 - y)) * (pt ** gamma)  # gamma: python int
        bce = jnp.maximum(x, 0.0) - x * y + jnp.log(1.0 + jnp.exp(-jnp.abs(x)))
        out_ref[3] = jnp.sum(bce * focal_w)

        out_ref[5] = f32(0.0)
        out_ref[6] = f32(0.0)
        out_ref[7] = f32(0.0)
        push_acc_ref[0] = f32(0.0)

    # ---------------- per-block push-loss partial sum --------------------------------
    # Rows [blk*tm, blk*tm + tm) against ALL columns; validity is a rank-1 outer product
    # (no [M, M] iota masks). Blocks entirely past n_matched are skipped at runtime.
    row0 = blk * tm

    @pl.when(row0 < n_valid)
    def _push_block():
        e_all = emb_ref[...]                                               # [Mp, D] bf16
        start = pl.multiple_of(row0, tm)
        e_blk = emb_ref[pl.ds(start, tm), :]                               # [tm, D] bf16
        gram = lax.dot_general(e_blk, e_all, (((1,), (1,)), ((), ())),
                               preferred_element_type=f32)                 # [tm, Mp] (bf16 MXU)
        eb = e_blk.astype(f32)
        sq_row = jnp.sum(eb * eb, axis=1, keepdims=True)                   # [tm, 1]
        sq_col = sqcol_ref[...]                                            # [1, Mp]
        d2 = jnp.maximum(sq_row + sq_col - 2.0 * gram, 0.0)
        # TODO(synk): add an epsilon under the sqrt before differentiating (grad of sqrt(0)).
        dist = jnp.sqrt(d2)
        viol = jnp.maximum(f32(margin) - dist, 0.0)
        viol = viol * viol
        mp = sq_col.shape[1]
        v_row = (row0 + lax.broadcasted_iota(jnp.int32, (tm, 1), 0)
                 < n_valid).astype(f32)
        v_col = (lax.broadcasted_iota(jnp.int32, (1, mp), 1)
                 < n_valid).astype(f32)
        push_acc_ref[0] = push_acc_ref[0] + jnp.sum(viol * v_row * v_col)

    # ---------------- last step: finalize (symmetric sum minus diagonal, halved) -----
    @pl.when(blk == n_blk - 1)
    def _finalize():
        n_f = n_valid.astype(f32)
        push_sum = (push_acc_ref[0] - n_f * f32(margin * margin)) * 0.5
        n_pairs = jnp.maximum(n_f * (n_f - 1.0) * 0.5, f32(1.0))
        out_ref[4] = jnp.where(n_valid >= 2, push_sum / n_pairs, f32(0.0))


# ----------------------------------------------------------------------------
# Wrapper
# ----------------------------------------------------------------------------
class SetCriterionPallas:
    """Pallas port of the SetCriterion loss head used by MainNet."""

    def __init__(self, losses, weight_dict, eos_coef, num_classes, rel_classes,
                 focal_alpha=0.25, focal_gamma=2, push_margin=60.0):
        self.num_classes = num_classes          # entity classes (no-object excluded)
        self.rel_classes = rel_classes
        self.losses = losses
        self.weight_dict = weight_dict
        self.eos_coef = float(eos_coef)
        self.focal_alpha = float(focal_alpha)
        self.focal_gamma = int(focal_gamma)     # keep integer: pt**2 -> one VPU multiply
        self.push_margin = float(push_margin)
        self._fn_cache = {}

    def _fused_fn(self, key):
        fn = self._fn_cache.get(key)
        if fn is not None:
            return fn
        (B, Q, Cp1, Qr, R, D, Cp1p, Qp, Mcap_pad, Rp, Rr, n_blocks) = key
        kernel = functools.partial(
            _fused_loss_kernel,
            num_classes=self.num_classes, eos_coef=self.eos_coef,
            alpha=self.focal_alpha, gamma=self.focal_gamma,
            margin=self.push_margin, real_q=Q, tm=_TM_PUSH)
        smem = pltpu.MemorySpace.SMEM
        grid_spec = pltpu.PrefetchScalarGridSpec(
            num_scalar_prefetch=0,
            grid=(n_blocks,),
            in_specs=[
                pl.BlockSpec((B, Cp1p, Qp), lambda i: (0, 0, 0)),   # entity logits (lane-dense)
                pl.BlockSpec((B, 1, Qp), lambda i: (0, 0, 0)),      # target class ids
                pl.BlockSpec((B, 1, 1), lambda i: (0, 0, 0)),       # per-batch gt lengths
                pl.BlockSpec((Rp, 128), lambda i: (0, 0)),          # matched pred pos slab
                pl.BlockSpec((Rp, 128), lambda i: (0, 0)),          # matched target pos slab
                pl.BlockSpec((Rr, 128), lambda i: (0, 0)),          # rel logit slab
                pl.BlockSpec((Rr, 128), lambda i: (0, 0)),          # rel target slab
                pl.BlockSpec((Mcap_pad, D), lambda i: (0, 0)),      # matched id-emb (bf16)
                pl.BlockSpec((1, Mcap_pad), lambda i: (0, 0)),      # ||e_j||^2 lane row
                pl.BlockSpec(memory_space=smem),                    # counts (int32)
                pl.BlockSpec(memory_space=smem),                    # denoms (f32)
            ],
            out_specs=pl.BlockSpec(memory_space=smem),
            scratch_shapes=[pltpu.SMEM((1,), jnp.float32)],
        )
        call = pl.pallas_call(
            kernel,
            out_shape=jax.ShapeDtypeStruct((8,), jnp.float32),
            grid_spec=grid_spec,
            compiler_params=pltpu.CompilerParams(
                # TODO(synk): the push row-block axis could be made "parallel" for v7x's
                # 2 TensorCores by emitting per-block partial sums instead of a scalar
                # accumulator; kept "arbitrary" here for the single-accumulator pattern.
                dimension_semantics=("arbitrary",),
                vmem_limit_bytes=48 * 1024 * 1024,   # > 32 MiB default, < v7x 64 MiB physical
            ),
        )
        fn = jax.jit(call)
        self._fn_cache[key] = fn
        return fn

    def forward(self, outputs, targets, indices_dict):
        ent_logits = jnp.asarray(outputs['pred_entity']['pred_logits'])   # [B, Q, C+1]
        pred_pos = jnp.asarray(outputs['pred_entity']['pred_pos'])        # [B, Q, 2]
        id_emb = jnp.asarray(outputs['pred_entity']['id_emb'])            # [B, Q, D]
        rel_logits = jnp.asarray(outputs['pred_rel']['pred_logits'])      # [B, Qr, R]
        B, Q, Cp1 = ent_logits.shape
        _, Qr, R = rel_logits.shape
        D = id_emb.shape[-1]
        C = self.num_classes

        ent_idx = indices_dict['entity']
        rel_idx = indices_dict['rel']

        # --- lane-dense entity logits: classes -> sublanes, queries -> lanes ------------
        Cp1p = _round_up(Cp1, 8)
        Qp = _round_up(Q, 128)
        lg_t = jnp.transpose(ent_logits.astype(jnp.float32), (0, 2, 1))    # [B, Cp1, Q]
        lg_t = jnp.pad(lg_t, ((0, 0), (0, Cp1p - Cp1), (0, Qp - Q)),
                       constant_values=_NEG_BIG)

        # TODO(synk): the host-side numpy target/index construction below forces a host
        # sync + H2D every step; production should build these on device / in the loader.
        tcls = np.full((B, 1, Qp), C, dtype=np.int32)
        for b, (src, tgt) in enumerate(ent_idx):
            cls = np.asarray(targets['entities'][b])[:, 2].astype(np.int32)
            tcls[b, 0, np.asarray(src, dtype=np.int64)] = cls[np.asarray(tgt, dtype=np.int64)]

        tgt_len = np.asarray([float(len(v)) for v in targets['entities']],
                             dtype=np.float32).reshape(B, 1, 1)

        # --- matched entities: fixed Mcap=B*Q bucket (one compiled kernel per shape) ----
        Mcap = B * Q
        Mcap_pad = _round_up(Mcap, _TM_PUSH)
        n_blocks = Mcap_pad // _TM_PUSH
        b_idx = np.zeros((Mcap,), np.int32)
        s_idx = np.zeros((Mcap,), np.int32)
        valid = np.zeros((Mcap, 1), np.float32)
        tgt_pos = np.zeros((Mcap, 2), np.float32)
        n_matched = 0
        for b, (src, tgt) in enumerate(ent_idx):
            src = np.asarray(src, dtype=np.int32)
            tgt = np.asarray(tgt, dtype=np.int64)
            n = src.shape[0]
            b_idx[n_matched:n_matched + n] = b
            s_idx[n_matched:n_matched + n] = src
            valid[n_matched:n_matched + n, 0] = 1.0
            tgt_pos[n_matched:n_matched + n] = (
                np.asarray(targets['entities'][b])[tgt, :2].astype(np.float32))
            n_matched += n
        num_span = float(sum(len(v) for v in targets['entities']))

        # TODO(synk): this XLA gather could move in-kernel (scalar-prefetched b_idx/s_idx
        # + pl.Element row gather) to avoid the extra HBM round trip at production D.
        src_pos = pred_pos[b_idx, s_idx].astype(jnp.float32) * valid       # [Mcap, 2]
        src_emb = id_emb[b_idx, s_idx].astype(jnp.float32) * valid         # [Mcap, D]

        # lane-dense slabs for the pure sums (padding contributes exactly zero)
        Rp = _slab_rows(Mcap * 2)
        pos_pred_slab = _to_slab(src_pos.reshape(-1), Rp)
        pos_tgt_slab = _to_slab(tgt_pos.reshape(-1), Rp)

        # --- relation multi-hot targets; logits padded with -30 so no in-kernel mask ----
        rel_tgt = np.zeros((B, Qr, R), np.float32)
        for b, (src, tgt) in enumerate(rel_idx):
            lbl = np.asarray(targets['rel_labels'][b], dtype=np.float32)
            rel_tgt[b, np.asarray(src, dtype=np.int64)] = lbl[np.asarray(tgt, dtype=np.int64)]
        Rr = _slab_rows(B * Qr * R)
        rel_logit_slab = _to_slab(rel_logits.reshape(-1), Rr, fill=-30.0)
        rel_tgt_slab = _to_slab(rel_tgt.reshape(-1), Rr, fill=0.0)

        # --- push loss inputs: bf16 embeddings + precomputed column norms ---------------
        emb_pad = jnp.pad(src_emb, ((0, Mcap_pad - Mcap), (0, 0)))
        emb_bf16 = emb_pad.astype(jnp.bfloat16)                            # bf16 MXU feed
        sq_col = jnp.sum(jnp.square(emb_bf16.astype(jnp.float32)),
                         axis=1).reshape(1, Mcap_pad)                      # consistent w/ Gram

        counts = jnp.asarray([n_matched], dtype=jnp.int32)
        denoms = jnp.asarray([num_span], dtype=jnp.float32)

        key = (B, Q, Cp1, Qr, R, D, Cp1p, Qp, Mcap_pad, Rp, Rr, n_blocks)
        fn = self._fused_fn(key)
        out = fn(lg_t, jnp.asarray(tcls), jnp.asarray(tgt_len),
                 pos_pred_slab, pos_tgt_slab, rel_logit_slab, rel_tgt_slab,
                 emb_bf16, sq_col, counts, denoms)

        slot = {'labels': ('loss_ce', 0), 'cardinality': ('cardinality_error', 1),
                'pos': ('loss_pos', 2), 'actions': ('rel_loss_ce', 3),
                'emb_push': ('loss_push', 4)}
        losses = {}
        for name in self.losses:
            if name in slot:
                k, i = slot[name]
                losses[k] = out[i]
            # TODO(synk): 'rel_vecs', 'rel_cardinality', 'emb_pull' not wired (emb_pull
            # needs data-dependent centroid matching with early returns).
        # TODO(synk): 'class_error' / 'rel_class_error' top-k logging metrics omitted.
        return losses


# ----------------------------------------------------------------------------
# Pure-numpy (float64) reference of the same losses, for a correctness check.
# ----------------------------------------------------------------------------
def _reference_losses(outputs, targets, indices_dict, C, eos_coef,
                      alpha=0.25, gamma=2, margin=60.0):
    logits = np.asarray(outputs['pred_entity']['pred_logits'], np.float64)
    pred_pos = np.asarray(outputs['pred_entity']['pred_pos'], np.float64)
    id_emb = np.asarray(outputs['pred_entity']['id_emb'], np.float64)
    rel_logits = np.asarray(outputs['pred_rel']['pred_logits'], np.float64)
    B, Q, Cp1 = logits.shape
    _, Qr, R = rel_logits.shape
    ent_idx = indices_dict['entity']
    rel_idx = indices_dict['rel']

    tcls = np.full((B, Q), C, np.int64)
    for b, (src, tgt) in enumerate(ent_idx):
        cls = np.asarray(targets['entities'][b])[:, 2].astype(np.int64)
        tcls[b, np.asarray(src)] = cls[np.asarray(tgt)]
    m = logits.max(-1, keepdims=True)
    lse = np.log(np.exp(logits - m).sum(-1, keepdims=True)) + m
    nll = lse[..., 0] - np.take_along_axis(logits, tcls[..., None], axis=-1)[..., 0]
    w = np.ones(Cp1); w[-1] = eos_coef
    wt = w[tcls]
    loss_ce = (wt * nll).sum() / wt.sum()

    card = (logits.argmax(-1) != C).sum(-1)
    tlen = np.array([len(v) for v in targets['entities']], np.float64)
    card_err = np.abs(card - tlen).mean()

    sp, tp = [], []
    for b, (src, tgt) in enumerate(ent_idx):
        sp.append(pred_pos[b, np.asarray(src)])
        tp.append(np.asarray(targets['entities'][b])[np.asarray(tgt), :2])
    sp = np.concatenate(sp); tp = np.concatenate(tp).astype(np.float64)
    num_span = float(sum(len(v) for v in targets['entities']))
    loss_pos = np.abs(sp - tp).sum() / max(num_span, 1.0)

    y = np.zeros((B, Qr, R))
    for b, (src, tgt) in enumerate(rel_idx):
        lbl = np.asarray(targets['rel_labels'][b], np.float64)
        y[b, np.asarray(src)] = lbl[np.asarray(tgt)]
    x = rel_logits
    p = 1.0 / (1.0 + np.exp(-x))
    pt = (1 - p) * y + p * (1 - y)
    fw = (alpha * y + (1 - alpha) * (1 - y)) * pt ** gamma
    bce = np.maximum(x, 0) - x * y + np.log1p(np.exp(-np.abs(x)))
    rel_loss = (bce * fw).sum()

    emb = np.concatenate([id_emb[b, np.asarray(src)] for b, (src, _) in enumerate(ent_idx)])
    M = emb.shape[0]
    if M < 2:
        loss_push = 0.0
    else:
        dist = np.sqrt(((emb[:, None, :] - emb[None, :, :]) ** 2).sum(-1))
        viol = np.maximum(margin - dist, 0.0) ** 2
        iu = np.tril_indices(M, k=-1)
        loss_push = viol[iu].sum() / (M * (M - 1) / 2.0)

    return {'loss_ce': loss_ce, 'cardinality_error': card_err, 'loss_pos': loss_pos,
            'rel_loss_ce': rel_loss, 'loss_push': loss_push}


# ----------------------------------------------------------------------------
# Main: deterministic synthetic inputs at small shapes
# ----------------------------------------------------------------------------
if __name__ == "__main__":
    B, Q, D = 2, 8, 32            # batch, entity queries, id-embedding dim
    C, R = 4, 6                   # entity classes (no-object excluded), relation classes
    Qr = 8                        # relation queries

    key = jax.random.PRNGKey(0)
    k1, k2, k3, k4 = jax.random.split(key, 4)

    # TODO(synk): backbone + transformer of MainNet are external torch modules; their
    # outputs (logits / positions / embeddings) are modeled here with deterministic randoms.
    outputs = {
        'pred_entity': {
            'pred_logits': jax.random.normal(k1, (B, Q, C + 1), jnp.float32),
            'pred_pos':    jax.random.normal(k2, (B, Q, 2), jnp.float32),
            'id_emb':      jax.random.normal(k3, (B, Q, D), jnp.float32),
        },
        'pred_rel': {
            'pred_logits': jax.random.normal(k4, (B, Qr, R), jnp.float32),
        },
    }

    # targets: per-batch entity spans [start, end, class] and multi-hot relation labels
    targets = {
        'entities': [
            np.array([[1, 3, 0], [4, 6, 2], [0, 2, 1]], dtype=np.float32),
            np.array([[2, 5, 3], [6, 7, 1]], dtype=np.float32),
        ],
        'rel_labels': [
            np.array([[1, 0, 0, 1, 0, 0],
                      [0, 1, 0, 0, 0, 1]], dtype=np.float32),
            np.array([[0, 0, 1, 0, 0, 0]], dtype=np.float32),
        ],
    }

    # TODO(synk): the Hungarian matcher (scipy linear_sum_assignment) has no clean Pallas
    # equivalent; the matching below is a precomputed deterministic assignment.
    indices_dict = {
        'entity': [(np.array([0, 2, 5]), np.array([0, 1, 2])),
                   (np.array([1, 4]),    np.array([0, 1]))],
        'rel':    [(np.array([0, 3]), np.array([0, 1])),
                   (np.array([2]),    np.array([0]))],
    }

    criterion = SetCriterionPallas(
        losses=['labels', 'cardinality', 'pos', 'actions', 'emb_push'],
        weight_dict={'loss_ce': 1.0, 'loss_pos': 1.0, 'rel_loss_ce': 1.0, 'loss_push': 1.0},
        eos_coef=0.1, num_classes=C, rel_classes=R)

    losses = criterion.forward(outputs, targets, indices_dict)
    losses = {k: jax.block_until_ready(v) for k, v in losses.items()}

    ref = _reference_losses(outputs, targets, indices_dict, C, eos_coef=0.1)
    # tolerance accounts for the intentional approximations (bf16 Gram, EUP approx
    # reciprocal in the focal sigmoid, -30 rel padding).
    for k, v in losses.items():
        v_np = np.asarray(v)
        assert np.isfinite(v_np), f"non-finite loss {k}"
        np.testing.assert_allclose(v_np, ref[k], rtol=2e-2, atol=2e-2,
                                   err_msg=f"mismatch for {k}")

    print("KERNEL_OK")
</pallas_src>

<mosaic_0001>
module attributes {stable_mosaic.version = 11 : i64} {
  func.func @_fused_loss_kernel(%arg0: i32, %arg1: memref<2x8x128xf32, #tpu.memory_space<vmem>>, %arg2: memref<2x1x128xi32, #tpu.memory_space<vmem>>, %arg3: memref<2x1x1xf32, #tpu.memory_space<vmem>>, %arg4: memref<8x128xf32, #tpu.memory_space<vmem>>, %arg5: memref<8x128xf32, #tpu.memory_space<vmem>>, %arg6: memref<8x128xf32, #tpu.memory_space<vmem>>, %arg7: memref<8x128xf32, #tpu.memory_space<vmem>>, %arg8: memref<256x32xbf16, #tpu.memory_space<vmem>>, %arg9: memref<1x256xf32, #tpu.memory_space<vmem>>, %arg10: memref<1xi32, #tpu.memory_space<smem>>, %arg11: memref<1xf32, #tpu.memory_space<smem>>, %arg12: memref<8xf32, #tpu.memory_space<smem>>, %arg13: memref<1xf32, #tpu.memory_space<smem>>) attributes {dimension_semantics = [#tpu.dimension_semantics<arbitrary>], iteration_bounds = array<i64: 1>, scalar_prefetch = 0 : i64, scratch_operands = 1 : i64, tpu.core_type = #tpu.core_type<tc>, window_params = [{pipeline_mode = #tpu.pipeline_mode<synchronous>, transform_indices = @transform_0, window_bounds = array<i64: 2, 8, 128>}, {pipeline_mode = #tpu.pipeline_mode<synchronous>, transform_indices = @transform_1, window_bounds = array<i64: 2, 1, 128>}, {pipeline_mode = #tpu.pipeline_mode<synchronous>, transform_indices = @transform_2, window_bounds = array<i64: 2, 1, 1>}, {pipeline_mode = #tpu.pipeline_mode<synchronous>, transform_indices = @transform_3, window_bounds = array<i64: 8, 128>}, {pipeline_mode = #tpu.pipeline_mode<synchronous>, transform_indices = @transform_4, window_bounds = array<i64: 8, 128>}, {pipeline_mode = #tpu.pipeline_mode<synchronous>, transform_indices = @transform_5, window_bounds = array<i64: 8, 128>}, {pipeline_mode = #tpu.pipeline_mode<synchronous>, transform_indices = @transform_6, window_bounds = array<i64: 8, 128>}, {pipeline_mode = #tpu.pipeline_mode<synchronous>, transform_indices = @transform_7, window_bounds = array<i64: 256, 32>}, {pipeline_mode = #tpu.pipeline_mode<synchronous>, transform_indices = @transform_8, window_bounds = array<i64: 1, 256>}, {transform_indices = @transform_9, window_bounds = array<i64: 1>}, {transform_indices = @transform_10, window_bounds = array<i64: 1>}, {transform_indices = @transform_11, window_bounds = array<i64: 8>}]} {
    %c0 = arith.constant 0 : index
    %0 = memref.load %arg10[%c0] : memref<1xi32, #tpu.memory_space<smem>>
    %c0_i32 = arith.constant 0 : i32
    %1 = arith.cmpi eq, %arg0, %c0_i32 : i32
    %2 = arith.extui %1 : i1 to i32
    %c0_i32_0 = arith.constant 0 : i32
    %3 = arith.cmpi ne, %2, %c0_i32_0 : i32
    scf.if %3 {
      %c0_4 = arith.constant 0 : index
      %c0_5 = arith.constant 0 : index
      %c0_6 = arith.constant 0 : index
      %11 = vector.load %arg1[%c0_4, %c0_5, %c0_6] : memref<2x8x128xf32, #tpu.memory_space<vmem>>, vector<2x8x128xf32>
      %12 = tpu.iota {dimensions = array<i32: 1>} : vector<2x8x128xi32>
      %c0_7 = arith.constant 0 : index
      %c0_8 = arith.constant 0 : index
      %c0_9 = arith.constant 0 : index
      %13 = vector.load %arg2[%c0_7, %c0_8, %c0_9] : memref<2x1x128xi32, #tpu.memory_space<vmem>>, vector<2x1x128xi32>
      %14 = tpu.iota {dimensions = array<i32: 2>} : vector<2x1x128xi32>
      %c8_i32 = arith.constant 8 : i32
      %15 = vector.broadcast %c8_i32 : i32 to vector<2x1x128xi32>
      %16 = arith.cmpi slt, %14, %15 : vector<2x1x128xi32>
      %17 = arith.extui %16 : vector<2x1x128xi1> to vector<2x1x128xi32>
      %18 = arith.sitofp %17 : vector<2x1x128xi32> to vector<2x1x128xf32>
      %19 = vector.broadcast %13 : vector<2x1x128xi32> to vector<2x8x128xi32>
      %20 = arith.cmpi eq, %12, %19 : vector<2x8x128xi32>
      %21 = arith.extui %20 : vector<2x8x128xi1> to vector<2x8x128xi32>
      %22 = arith.sitofp %21 : vector<2x8x128xi32> to vector<2x8x128xf32>
      %cst = arith.constant dense<0xFF800000> : vector<2x128xf32>
      %23 = vector.multi_reduction <maximumf>, %11, %cst [1] : vector<2x8x128xf32> to vector<2x128xf32>
      %24 = vector.shape_cast %23 : vector<2x128xf32> to vector<2x1x128xf32>
      %25 = vector.broadcast %24 : vector<2x1x128xf32> to vector<2x8x128xf32>
      %26 = arith.subf %11, %25 : vector<2x8x128xf32>
      %27 = math.exp %26 : vector<2x8x128xf32>
      %cst_10 = arith.constant dense<0.000000e+00> : vector<2x128xf32>
      %28 = vector.multi_reduction <add>, %27, %cst_10 [1] : vector<2x8x128xf32> to vector<2x128xf32>
      %29 = vector.shape_cast %28 : vector<2x128xf32> to vector<2x1x128xf32>
      %30 = math.log %29 : vector<2x1x128xf32>
      %31 = arith.addf %30, %24 : vector<2x1x128xf32>
      %32 = arith.mulf %22, %11 : vector<2x8x128xf32>
      %cst_11 = arith.constant dense<0.000000e+00> : vector<2x128xf32>
      %33 = vector.multi_reduction <add>, %32, %cst_11 [1] : vector<2x8x128xf32> to vector<2x128xf32>
      %34 = vector.shape_cast %33 : vector<2x128xf32> to vector<2x1x128xf32>
      %c4_i32 = arith.constant 4 : i32
      %35 = vector.broadcast %c4_i32 : i32 to vector<2x1x128xi32>
      %36 = arith.cmpi eq, %13, %35 : vector<2x1x128xi32>
      %cst_12 = arith.constant 1.000000e-01 : f32
      %cst_13 = arith.constant 1.000000e+00 : f32
      %37 = vector.broadcast %cst_12 : f32 to vector<2x1x128xf32>
      %38 = vector.broadcast %cst_13 : f32 to vector<2x1x128xf32>
      %39 = arith.select %36, %37, %38 : vector<2x1x128xi1>, vector<2x1x128xf32>
      %40 = arith.mulf %39, %18 : vector<2x1x128xf32>
      %41 = arith.subf %31, %34 : vector<2x1x128xf32>
      %42 = arith.mulf %40, %41 : vector<2x1x128xf32>
      %43 = vector.shape_cast %42 : vector<2x1x128xf32> to vector<1x2x1x128xf32>
      %cst_14 = arith.constant dense<0.000000e+00> : vector<1xf32>
      %44 = vector.multi_reduction <add>, %43, %cst_14 [1, 2, 3] : vector<1x2x1x128xf32> to vector<1xf32>
      %45 = vector.shape_cast %44 : vector<1xf32> to vector<1x1x1x1xf32>
      %46 = vector.extract %45[0, 0, 0, 0] : f32 from vector<1x1x1x1xf32>
      %47 = vector.shape_cast %40 : vector<2x1x128xf32> to vector<1x2x1x128xf32>
      %cst_15 = arith.constant dense<0.000000e+00> : vector<1xf32>
      %48 = vector.multi_reduction <add>, %47, %cst_15 [1, 2, 3] : vector<1x2x1x128xf32> to vector<1xf32>
      %49 = vector.shape_cast %48 : vector<1xf32> to vector<1x1x1x1xf32>
      %50 = vector.extract %49[0, 0, 0, 0] : f32 from vector<1x1x1x1xf32>
      %51 = arith.divf %46, %50 : f32
      %c0_16 = arith.constant 0 : index
      %52 = memref.load %arg12[%c0_16] : memref<8xf32, #tpu.memory_space<smem>>
      memref.store %51, %arg12[%c0_16] : memref<8xf32, #tpu.memory_space<smem>>
      %c4_i32_17 = arith.constant 4 : i32
      %53 = vector.broadcast %c4_i32_17 : i32 to vector<2x8x128xi32>
      %54 = arith.cmpi slt, %12, %53 : vector<2x8x128xi32>
      %cst_18 = arith.constant -1.000000e+30 : f32
      %55 = vector.broadcast %cst_18 : f32 to vector<2x8x128xf32>
      %56 = arith.select %54, %11, %55 : vector<2x8x128xi1>, vector<2x8x128xf32>
      %cst_19 = arith.constant dense<0xFF800000> : vector<2x128xf32>
      %57 = vector.multi_reduction <maximumf>, %56, %cst_19 [1] : vector<2x8x128xf32> to vector<2x128xf32>
      %58 = vector.shape_cast %57 : vector<2x128xf32> to vector<2x1x128xf32>
      %c4_i32_20 = arith.constant 4 : i32
      %59 = vector.broadcast %c4_i32_20 : i32 to vector<2x8x128xi32>
      %60 = arith.cmpi eq, %12, %59 : vector<2x8x128xi32>
      %cst_21 = arith.constant 0.000000e+00 : f32
      %61 = vector.broadcast %cst_21 : f32 to vector<2x8x128xf32>
      %62 = arith.select %60, %11, %61 : vector<2x8x128xi1>, vector<2x8x128xf32>
      %cst_22 = arith.constant dense<0.000000e+00> : vector<2x128xf32>
      %63 = vector.multi_reduction <add>, %62, %cst_22 [1] : vector<2x8x128xf32> to vector<2x128xf32>
      %64 = vector.shape_cast %63 : vector<2x128xf32> to vector<2x1x128xf32>
      %65 = arith.cmpf oge, %58, %64 : vector<2x1x128xf32>
      %cst_23 = arith.constant 0.000000e+00 : f32
      %66 = vector.broadcast %cst_23 : f32 to vector<2x1x128xf32>
      %67 = arith.select %65, %18, %66 : vector<2x1x128xi1>, vector<2x1x128xf32>
      %cst_24 = arith.constant dense<0.000000e+00> : vector<2x1xf32>
      %68 = vector.multi_reduction <add>, %67, %cst_24 [2] : vector<2x1x128xf32> to vector<2x1xf32>
      %69 = vector.shape_cast %68 : vector<2x1xf32> to vector<2x1x1xf32>
      %c0_25 = arith.constant 0 : index
      %c0_26 = arith.constant 0 : index
      %c0_27 = arith.constant 0 : index
      %70 = vector.load %arg3[%c0_25, %c0_26, %c0_27] : memref<2x1x1xf32, #tpu.memory_space<vmem>>, vector<2x1x1xf32>
      %71 = arith.subf %69, %70 : vector<2x1x1xf32>
      %72 = math.absf %71 : vector<2x1x1xf32>
      %73 = vector.shape_cast %72 : vector<2x1x1xf32> to vector<1x2x1x1xf32>
      %cst_28 = arith.constant dense<0.000000e+00> : vector<1xf32>
      %74 = vector.multi_reduction <add>, %73, %cst_28 [1, 2, 3] : vector<1x2x1x1xf32> to vector<1xf32>
      %75 = vector.shape_cast %74 : vector<1xf32> to vector<1x1x1x1xf32>
      %76 = vector.extract %75[0, 0, 0, 0] : f32 from vector<1x1x1x1xf32>
      %cst_29 = arith.constant 2.000000e+00 : f32
      %77 = arith.divf %76, %cst_29 : f32
      %c1 = arith.constant 1 : index
      %78 = memref.load %arg12[%c1] : memref<8xf32, #tpu.memory_space<smem>>
      memref.store %77, %arg12[%c1] : memref<8xf32, #tpu.memory_space<smem>>
      %c0_30 = arith.constant 0 : index
      %c0_31 = arith.constant 0 : index
      %79 = vector.load %arg4[%c0_30, %c0_31] : memref<8x128xf32, #tpu.memory_space<vmem>>, vector<8x128xf32>
      %c0_32 = arith.constant 0 : index
      %c0_33 = arith.constant 0 : index
      %80 = vector.load %arg5[%c0_32, %c0_33] : memref<8x128xf32, #tpu.memory_space<vmem>>, vector<8x128xf32>
      %81 = arith.subf %79, %80 : vector<8x128xf32>
      %82 = math.absf %81 : vector<8x128xf32>
      %83 = vector.shape_cast %82 : vector<8x128xf32> to vector<1x8x128xf32>
      %cst_34 = arith.constant dense<0.000000e+00> : vector<1xf32>
      %84 = vector.multi_reduction <add>, %83, %cst_34 [1, 2] : vector<1x8x128xf32> to vector<1xf32>
      %85 = vector.shape_cast %84 : vector<1xf32> to vector<1x1x1xf32>
      %86 = vector.extract %85[0, 0, 0] : f32 from vector<1x1x1xf32>
      %c0_35 = arith.constant 0 : index
      %87 = memref.load %arg11[%c0_35] : memref<1xf32, #tpu.memory_space<smem>>
      %cst_36 = arith.constant 1.000000e+00 : f32
      %88 = arith.maximumf %87, %cst_36 : f32
      %89 = arith.divf %86, %88 : f32
      %c2 = arith.constant 2 : index
      %90 = memref.load %arg12[%c2] : memref<8xf32, #tpu.memory_space<smem>>
      memref.store %89, %arg12[%c2] : memref<8xf32, #tpu.memory_space<smem>>
      %c0_37 = arith.constant 0 : index
      %c0_38 = arith.constant 0 : index
      %91 = vector.load %arg6[%c0_37, %c0_38] : memref<8x128xf32, #tpu.memory_space<vmem>>, vector<8x128xf32>
      %c0_39 = arith.constant 0 : index
      %c0_40 = arith.constant 0 : index
      %92 = vector.load %arg7[%c0_39, %c0_40] : memref<8x128xf32, #tpu.memory_space<vmem>>, vector<8x128xf32>
      %cst_41 = arith.constant 0.000000e+00 : f32
      %93 = vector.broadcast %cst_41 : f32 to vector<8x128xf32>
      %94 = arith.subf %93, %91 : vector<8x128xf32>
      %95 = math.exp %94 : vector<8x128xf32>
      %cst_42 = arith.constant 1.000000e+00 : f32
      %96 = vector.broadcast %cst_42 : f32 to vector<8x128xf32>
      %97 = arith.addf %96, %95 : vector<8x128xf32>
      %98 = tpu.reciprocal %97 {approx = true} : vector<8x128xf32> -> vector<8x128xf32>
      %cst_43 = arith.constant 1.000000e+00 : f32
      %99 = vector.broadcast %cst_43 : f32 to vector<8x128xf32>
      %100 = arith.subf %99, %98 : vector<8x128xf32>
      %101 = arith.mulf %100, %92 : vector<8x128xf32>
      %cst_44 = arith.constant 1.000000e+00 : f32
      %102 = vector.broadcast %cst_44 : f32 to vector<8x128xf32>
      %103 = arith.subf %102, %92 : vector<8x128xf32>
      %104 = arith.mulf %98, %103 : vector<8x128xf32>
      %105 = arith.addf %101, %104 : vector<8x128xf32>
      %cst_45 = arith.constant 2.500000e-01 : f32
      %106 = vector.broadcast %cst_45 : f32 to vector<8x128xf32>
      %107 = arith.mulf %106, %92 : vector<8x128xf32>
      %cst_46 = arith.constant 1.000000e+00 : f32
      %108 = vector.broadcast %cst_46 : f32 to vector<8x128xf32>
      %109 = arith.subf %108, %92 : vector<8x128xf32>
      %cst_47 = arith.constant 7.500000e-01 : f32
      %110 = vector.broadcast %cst_47 : f32 to vector<8x128xf32>
      %111 = arith.mulf %110, %109 : vector<8x128xf32>
      %112 = arith.addf %107, %111 : vector<8x128xf32>
      %113 = arith.mulf %105, %105 : vector<8x128xf32>
      %114 = arith.mulf %112, %113 : vector<8x128xf32>
      %cst_48 = arith.constant 0.000000e+00 : f32
      %115 = vector.broadcast %cst_48 : f32 to vector<8x128xf32>
      %116 = arith.maximumf %91, %115 : vector<8x128xf32>
      %117 = arith.mulf %91, %92 : vector<8x128xf32>
      %118 = arith.subf %116, %117 : vector<8x128xf32>
      %119 = math.absf %91 : vector<8x128xf32>
      %cst_49 = arith.constant 0.000000e+00 : f32
      %120 = vector.broadcast %cst_49 : f32 to vector<8x128xf32>
      %121 = arith.subf %120, %119 : vector<8x128xf32>
      %122 = math.exp %121 : vector<8x128xf32>
      %cst_50 = arith.constant 1.000000e+00 : f32
      %123 = vector.broadcast %cst_50 : f32 to vector<8x128xf32>
      %124 = arith.addf %123, %122 : vector<8x128xf32>
      %125 = math.log %124 : vector<8x128xf32>
      %126 = arith.addf %118, %125 : vector<8x128xf32>
      %127 = arith.mulf %126, %114 : vector<8x128xf32>
      %128 = vector.shape_cast %127 : vector<8x128xf32> to vector<1x8x128xf32>
      %cst_51 = arith.constant dense<0.000000e+00> : vector<1xf32>
      %129 = vector.multi_reduction <add>, %128, %cst_51 [1, 2] : vector<1x8x128xf32> to vector<1xf32>
      %130 = vector.shape_cast %129 : vector<1xf32> to vector<1x1x1xf32>
      %131 = vector.extract %130[0, 0, 0] : f32 from vector<1x1x1xf32>
      %c3 = arith.constant 3 : index
      %132 = memref.load %arg12[%c3] : memref<8xf32, #tpu.memory_space<smem>>
      memref.store %131, %arg12[%c3] : memref<8xf32, #tpu.memory_space<smem>>
      %cst_52 = arith.constant 0.000000e+00 : f32
      %c5 = arith.constant 5 : index
      %133 = memref.load %arg12[%c5] : memref<8xf32, #tpu.memory_space<smem>>
      memref.store %cst_52, %arg12[%c5] : memref<8xf32, #tpu.memory_space<smem>>
      %cst_53 = arith.constant 0.000000e+00 : f32
      %c6 = arith.constant 6 : index
      %134 = memref.load %arg12[%c6] : memref<8xf32, #tpu.memory_space<smem>>
      memref.store %cst_53, %arg12[%c6] : memref<8xf32, #tpu.memory_space<smem>>
      %cst_54 = arith.constant 0.000000e+00 : f32
      %c7 = arith.constant 7 : index
      %135 = memref.load %arg12[%c7] : memref<8xf32, #tpu.memory_space<smem>>
      memref.store %cst_54, %arg12[%c7] : memref<8xf32, #tpu.memory_space<smem>>
      %cst_55 = arith.constant 0.000000e+00 : f32
      %c0_56 = arith.constant 0 : index
      %136 = memref.load %arg13[%c0_56] : memref<1xf32, #tpu.memory_space<smem>>
      memref.store %cst_55, %arg13[%c0_56] : memref<1xf32, #tpu.memory_space<smem>>
    } else {
    }
    %c256_i32 = arith.constant 256 : i32
    %4 = arith.muli %arg0, %c256_i32 : i32
    %5 = arith.cmpi slt, %4, %0 : i32
    %6 = arith.extui %5 : i1 to i32
    %c0_i32_1 = arith.constant 0 : i32
    %7 = arith.cmpi ne, %6, %c0_i32_1 : i32
    scf.if %7 {
      %c0_4 = arith.constant 0 : index
      %c0_5 = arith.constant 0 : index
      %11 = vector.load %arg8[%c0_4, %c0_5] : memref<256x32xbf16, #tpu.memory_space<vmem>>, vector<256x32xbf16>
      %12 = tpu.assume_multiple %4, 256 : i32
      %13 = arith.index_cast %12 : i32 to index
      %c0_6 = arith.constant 0 : index
      %14 = vector.load %arg8[%13, %c0_6] : memref<256x32xbf16, #tpu.memory_space<vmem>>, vector<256x32xbf16>
      %cst = arith.constant dense<0.000000e+00> : vector<256x256xf32>
      %15 = tpu.matmul %14, %11, %cst {dimension_numbers = #tpu.dot_dimension_numbers<[1], [1], [0], [0], [0, 0, 1, 0], [], []>} : vector<256x32xbf16>, vector<256x32xbf16>, vector<256x256xf32> -> vector<256x256xf32>
      %16 = arith.extf %14 : vector<256x32xbf16> to vector<256x32xf32>
      %17 = arith.mulf %16, %16 : vector<256x32xf32>
      %cst_7 = arith.constant dense<0.000000e+00> : vector<256xf32>
      %18 = vector.multi_reduction <add>, %17, %cst_7 [1] : vector<256x32xf32> to vector<256xf32>
      %19 = vector.shape_cast %18 : vector<256xf32> to vector<256x1xf32>
      %c0_8 = arith.constant 0 : index
      %c0_9 = arith.constant 0 : index
      %20 = vector.load %arg9[%c0_8, %c0_9] : memref<1x256xf32, #tpu.memory_space<vmem>>, vector<1x256xf32>
      %21 = vector.broadcast %19 : vector<256x1xf32> to vector<256x256xf32>
      %22 = vector.broadcast %20 : vector<1x256xf32> to vector<256x256xf32>
      %23 = arith.addf %21, %22 : vector<256x256xf32>
      %cst_10 = arith.constant 2.000000e+00 : f32
      %24 = vector.broadcast %cst_10 : f32 to vector<256x256xf32>
      %25 = arith.mulf %24, %15 : vector<256x256xf32>
      %26 = arith.subf %23, %25 : vector<256x256xf32>
      %cst_11 = arith.constant 0.000000e+00 : f32
      %27 = vector.broadcast %cst_11 : f32 to vector<256x256xf32>
      %28 = arith.maximumf %26, %27 : vector<256x256xf32>
      %29 = math.sqrt %28 : vector<256x256xf32>
      %cst_12 = arith.constant 6.000000e+01 : f32
      %30 = vector.broadcast %cst_12 : f32 to vector<256x256xf32>
      %31 = arith.subf %30, %29 : vector<256x256xf32>
      %cst_13 = arith.constant 0.000000e+00 : f32
      %32 = vector.broadcast %cst_13 : f32 to vector<256x256xf32>
      %33 = arith.maximumf %31, %32 : vector<256x256xf32>
      %34 = arith.mulf %33, %33 : vector<256x256xf32>
      %35 = tpu.iota {dimensions = array<i32: 0>} : vector<256x1xi32>
      %36 = vector.broadcast %4 : i32 to vector<256x1xi32>
      %37 = arith.addi %36, %35 : vector<256x1xi32>
      %38 = vector.broadcast %0 : i32 to vector<256x1xi32>
      %39 = arith.cmpi slt, %37, %38 : vector<256x1xi32>
      %40 = arith.extui %39 : vector<256x1xi1> to vector<256x1xi32>
      %41 = arith.sitofp %40 : vector<256x1xi32> to vector<256x1xf32>
      %42 = tpu.iota {dimensions = array<i32: 1>} : vector<1x256xi32>
      %43 = vector.broadcast %0 : i32 to vector<1x256xi32>
      %44 = arith.cmpi slt, %42, %43 : vector<1x256xi32>
      %45 = arith.extui %44 : vector<1x256xi1> to vector<1x256xi32>
      %46 = arith.sitofp %45 : vector<1x256xi32> to vector<1x256xf32>
      %c0_14 = arith.constant 0 : index
      %47 = memref.load %arg13[%c0_14] : memref<1xf32, #tpu.memory_space<smem>>
      %48 = vector.broadcast %41 : vector<256x1xf32> to vector<256x256xf32>
      %49 = arith.mulf %34, %48 : vector<256x256xf32>
      %50 = vector.broadcast %46 : vector<1x256xf32> to vector<256x256xf32>
      %51 = arith.mulf %49, %50 : vector<256x256xf32>
      %52 = vector.shape_cast %51 : vector<256x256xf32> to vector<1x256x256xf32>
      %cst_15 = arith.constant dense<0.000000e+00> : vector<1xf32>
      %53 = vector.multi_reduction <add>, %52, %cst_15 [1, 2] : vector<1x256x256xf32> to vector<1xf32>
      %54 = vector.shape_cast %53 : vector<1xf32> to vector<1x1x1xf32>
      %55 = vector.extract %54[0, 0, 0] : f32 from vector<1x1x1xf32>
      %56 = arith.addf %47, %55 : f32
      %c0_16 = arith.constant 0 : index
      %57 = memref.load %arg13[%c0_16] : memref<1xf32, #tpu.memory_space<smem>>
      memref.store %56, %arg13[%c0_16] : memref<1xf32, #tpu.memory_space<smem>>
    } else {
    }
    %c0_i32_2 = arith.constant 0 : i32
    %8 = arith.cmpi eq, %arg0, %c0_i32_2 : i32
    %9 = arith.extui %8 : i1 to i32
    %c0_i32_3 = arith.constant 0 : i32
    %10 = arith.cmpi ne, %9, %c0_i32_3 : i32
    scf.if %10 {
      %11 = arith.sitofp %0 : i32 to f32
      %c0_4 = arith.constant 0 : index
      %12 = memref.load %arg13[%c0_4] : memref<1xf32, #tpu.memory_space<smem>>
      %cst = arith.constant 3.600000e+03 : f32
      %13 = arith.mulf %11, %cst : f32
      %14 = arith.subf %12, %13 : f32
      %cst_5 = arith.constant 5.000000e-01 : f32
      %15 = arith.mulf %14, %cst_5 : f32
      %cst_6 = arith.constant 1.000000e+00 : f32
      %16 = arith.subf %11, %cst_6 : f32
      %17 = arith.mulf %11, %16 : f32
      %cst_7 = arith.constant 5.000000e-01 : f32
      %18 = arith.mulf %17, %cst_7 : f32
      %cst_8 = arith.constant 1.000000e+00 : f32
      %19 = arith.maximumf %18, %cst_8 : f32
      %c2_i32 = arith.constant 2 : i32
      %20 = arith.cmpi sge, %0, %c2_i32 : i32
      %21 = arith.divf %15, %19 : f32
      %cst_9 = arith.constant 0.000000e+00 : f32
      %22 = arith.select %20, %21, %cst_9 : f32
      %c4 = arith.constant 4 : index
      %23 = memref.load %arg12[%c4] : memref<8xf32, #tpu.memory_space<smem>>
      memref.store %22, %arg12[%c4] : memref<8xf32, #tpu.memory_space<smem>>
    } else {
    }
    return
  }
  func.func @transform_0(%arg0: i32) -> (i32, i32, i32) {
    %c0_i32 = arith.constant 0 : i32
    %c0_i32_0 = arith.constant 0 : i32
    %c0_i32_1 = arith.constant 0 : i32
    %c0_i32_2 = arith.constant 0 : i32
    return %c0_i32, %c0_i32_0, %c0_i32_1 : i32, i32, i32
  }
  func.func @transform_1(%arg0: i32) -> (i32, i32, i32) {
    %c0_i32 = arith.constant 0 : i32
    %c0_i32_0 = arith.constant 0 : i32
    %c0_i32_1 = arith.constant 0 : i32
    %c0_i32_2 = arith.constant 0 : i32
    return %c0_i32, %c0_i32_0, %c0_i32_1 : i32, i32, i32
  }
  func.func @transform_2(%arg0: i32) -> (i32, i32, i32) {
    %c0_i32 = arith.constant 0 : i32
    %c0_i32_0 = arith.constant 0 : i32
    %c0_i32_1 = arith.constant 0 : i32
    %c0_i32_2 = arith.constant 0 : i32
    return %c0_i32, %c0_i32_0, %c0_i32_1 : i32, i32, i32
  }
  func.func @transform_3(%arg0: i32) -> (i32, i32) {
    %c0_i32 = arith.constant 0 : i32
    %c0_i32_0 = arith.constant 0 : i32
    %c0_i32_1 = arith.constant 0 : i32
    return %c0_i32, %c0_i32_0 : i32, i32
  }
  func.func @transform_4(%arg0: i32) -> (i32, i32) {
    %c0_i32 = arith.constant 0 : i32
    %c0_i32_0 = arith.constant 0 : i32
    %c0_i32_1 = arith.constant 0 : i32
    return %c0_i32, %c0_i32_0 : i32, i32
  }
  func.func @transform_5(%arg0: i32) -> (i32, i32) {
    %c0_i32 = arith.constant 0 : i32
    %c0_i32_0 = arith.constant 0 : i32
    %c0_i32_1 = arith.constant 0 : i32
    return %c0_i32, %c0_i32_0 : i32, i32
  }
  func.func @transform_6(%arg0: i32) -> (i32, i32) {
    %c0_i32 = arith.constant 0 : i32
    %c0_i32_0 = arith.constant 0 : i32
    %c0_i32_1 = arith.constant 0 : i32
    return %c0_i32, %c0_i32_0 : i32, i32
  }
  func.func @transform_7(%arg0: i32) -> (i32, i32) {
    %c0_i32 = arith.constant 0 : i32
    %c0_i32_0 = arith.constant 0 : i32
    %c0_i32_1 = arith.constant 0 : i32
    return %c0_i32, %c0_i32_0 : i32, i32
  }
  func.func @transform_8(%arg0: i32) -> (i32, i32) {
    %c0_i32 = arith.constant 0 : i32
    %c0_i32_0 = arith.constant 0 : i32
    %c0_i32_1 = arith.constant 0 : i32
    return %c0_i32, %c0_i32_0 : i32, i32
  }
  func.func @transform_9(%arg0: i32) -> i32 {
    %c0_i32 = arith.constant 0 : i32
    %c0_i32_0 = arith.constant 0 : i32
    return %c0_i32 : i32
  }
  func.func @transform_10(%arg0: i32) -> i32 {
    %c0_i32 = arith.constant 0 : i32
    %c0_i32_0 = arith.constant 0 : i32
    return %c0_i32 : i32
  }
  func.func @transform_11(%arg0: i32) -> i32 {
    %c0_i32 = arith.constant 0 : i32
    %c0_i32_0 = arith.constant 0 : i32
    return %c0_i32 : i32
  }
}

</mosaic_0001>

<llo_original>
// kernel: tpu_custom_call.1
$region0: #{tpu_custom_call.1}
  #allocation0 [shape = 'u32[]', space=smem, size = 0x4, offset = 0x4, fixed_abs, tag = 'smem constant byte address 0x4 - core index']
  #allocation1 [shape = 'u32[144,128]{1,0:T(1,128)}', space=vmem, size = 0x12000, scoped, tag = 'internal scratch']
  #allocation2 [shape = 'f32[1]{0:T(128)}', space=smem, size = 0x200, scoped, tag = 'scratch operand']
  #allocation3 [shape = 's32[1]{0:T(128)S(6)}', space=smem, size = 0x200, scoped, tag = 'scoped memory for tpu_custom_call.1']
  #allocation4 [shape = 'f32[1]{0:T(128)S(6)}', space=smem, size = 0x200, scoped, tag = 'scoped memory for tpu_custom_call.1']
  %s0 = inlined_call_operand.vmem [shape: f32[2,8,128], index: 0, kind: input, shape index: {}]
  %s1 = inlined_call_operand.vmem [shape: s32[2,1,128], index: 1, kind: input, shape index: {}]
  %s2 = inlined_call_operand.vmem [shape: f32[2,1,1], index: 2, kind: input, shape index: {}]
  %s3 = inlined_call_operand.vmem [shape: f32[8,128], index: 3, kind: input, shape index: {}]
  %s4 = inlined_call_operand.vmem [shape: f32[8,128], index: 4, kind: input, shape index: {}]
  %s5 = inlined_call_operand.vmem [shape: f32[8,128], index: 5, kind: input, shape index: {}]
  %s6 = inlined_call_operand.vmem [shape: f32[8,128], index: 6, kind: input, shape index: {}]
  %s7 = inlined_call_operand.vmem [shape: bf16[256,32], index: 7, kind: input, shape index: {}]
  %s8 = inlined_call_operand.vmem [shape: f32[1,256], index: 8, kind: input, shape index: {}]
  %s9 = inlined_call_operand.<no memory space> [shape: s32[1], index: 9, kind: input, shape index: {}]
  %s10 = inlined_call_operand.<no memory space> [shape: f32[1], index: 10, kind: input, shape index: {}]
  %s11 = inlined_call_operand.hbm [shape: f32[8], index: 11, kind: output, shape index: {}]
  %s12 = sld [smem:[#allocation0]]
  $region66: #{tpu_custom_call.1} parent=0
    _
  %s14 = ssub.s32 1, %s12
  %s15 = scalar_select 0, %s14, %s12
  %16 = sst [smem:[#allocation3]] %s9
  %17 = sst [smem:[#allocation4]] %s10
  $region1: #{tpu_custom_call.1} parent=0
    #allocation5 [shape = 'u8[512]{0}', space=smem, size = 0x200, scoped, tag = 'output window, operand 0, single buffered']
    #allocation6 [shape = 's32[1]{0}', space=sflag, size = 0x4, scoped, tag = 'scoped memory for tpu_custom_call.1']
    %18 = vsyncpa [#allocation6], 0
    // Predicated region
    $region2: #{tpu_custom_call.1} parent=1 // pred_check
      _
    $region3: #{tpu_custom_call.1} parent=1 // pred_check_branch
      %20 = sbr.rel (0) target = $region5
    $region4: #{tpu_custom_call.1} parent=1 // pred_region
      _
    $region5: #{tpu_custom_call.1} parent=1 // pred_fallthru
      _
    // Predicated region
    $region6: #{tpu_custom_call.1} parent=1 // pred_check
      _
    $region7: #{tpu_custom_call.1} parent=1 // pred_check_branch
      %22 = sbr.rel (0) target = $region9
    $region8: #{tpu_custom_call.1} parent=1 // pred_region
      _
    $region9: #{tpu_custom_call.1} parent=1 // pred_fallthru
      _
    // Predicated region
    $region10: #{tpu_custom_call.1} parent=1 // pred_check
      _
    $region11: #{tpu_custom_call.1} parent=1 // pred_check_branch
      %24 = sbr.rel (0) target = $region13
    $region12: #{tpu_custom_call.1} parent=1 // pred_region
      _
    $region13: #{tpu_custom_call.1} parent=1 // pred_fallthru
      _
    // Predicated region
    $region14: #{tpu_custom_call.1} parent=1 // pred_check
      _
    $region15: #{tpu_custom_call.1} parent=1 // pred_check_branch
      %26 = sbr.rel (0) target = $region17
    $region16: #{tpu_custom_call.1} parent=1 // pred_region
      _
    $region17: #{tpu_custom_call.1} parent=1 // pred_fallthru
      _
    // Predicated region
    $region18: #{tpu_custom_call.1} parent=1 // pred_check
      _
    $region19: #{tpu_custom_call.1} parent=1 // pred_check_branch
      %28 = sbr.rel (0) target = $region21
    $region20: #{tpu_custom_call.1} parent=1 // pred_region
      _
    $region21: #{tpu_custom_call.1} parent=1 // pred_fallthru
      _
    // Predicated region
    $region22: #{tpu_custom_call.1} parent=1 // pred_check
      _
    $region23: #{tpu_custom_call.1} parent=1 // pred_check_branch
      %30 = sbr.rel (0) target = $region25
    $region24: #{tpu_custom_call.1} parent=1 // pred_region
      _
    $region25: #{tpu_custom_call.1} parent=1 // pred_fallthru
      _
    // Predicated region
    $region26: #{tpu_custom_call.1} parent=1 // pred_check
      _
    $region27: #{tpu_custom_call.1} parent=1 // pred_check_branch
      %32 = sbr.rel (0) target = $region29
    $region28: #{tpu_custom_call.1} parent=1 // pred_region
      _
    $region29: #{tpu_custom_call.1} parent=1 // pred_fallthru
      _
    // Predicated region
    $region30: #{tpu_custom_call.1} parent=1 // pred_check
      _
    $region31: #{tpu_custom_call.1} parent=1 // pred_check_branch
      %34 = sbr.rel (0) target = $region33
    $region32: #{tpu_custom_call.1} parent=1 // pred_region
      _
    $region33: #{tpu_custom_call.1} parent=1 // pred_fallthru
      _
    // Predicated region
    $region34: #{tpu_custom_call.1} parent=1 // pred_check
      _
    $region35: #{tpu_custom_call.1} parent=1 // pred_check_branch
      %36 = sbr.rel (0) target = $region37
    $region36: #{tpu_custom_call.1} parent=1 // pred_region
      _
    $region37: #{tpu_custom_call.1} parent=1 // pred_fallthru
      _
    // Predicated region
    $region38: #{tpu_custom_call.1} parent=1 // pred_check
      _
    $region39: #{tpu_custom_call.1} parent=1 // pred_check_branch
      %38 = sbr.rel (0) target = $region41
    $region40: #{tpu_custom_call.1} parent=1 // pred_region
      _
    $region41: #{tpu_custom_call.1} parent=1 // pred_fallthru
      _
    // Predicated region
    $region42: #{tpu_custom_call.1} parent=1 // pred_check
      _
    $region43: #{tpu_custom_call.1} parent=1 // pred_check_branch
      %40 = sbr.rel (0) target = $region45
    $region44: #{tpu_custom_call.1} parent=1 // pred_region
      _
    $region45: #{tpu_custom_call.1} parent=1 // pred_fallthru
      _
    %s42 = sld [smem:[#allocation3]]
    %p43 = scmp.eq.s32.totalorder 0, 0
    // Predicated region
    $region46: #{tpu_custom_call.1} parent=1 // pred_check
      %p44 = pneg %p43
    $region47: #{tpu_custom_call.1} parent=1 // pred_check_branch
      %46 = sbr.rel (%p44) target = $region49
    $region48: #{tpu_custom_call.1} parent=1 // pred_region
      %v47 = vld [vmem:[%s0] sm:$0xff]
      %v48 = vld [vmem:[%s0 + $0x8] sm:$0xff]
      %v49 = vlaneseq
      %v50 = vshrl.u32 %v49, 7
      %v51 = vld [vmem:[%s1] sm:$0x1]
      %v52 = vld [vmem:[%s1 + $0x1] sm:$0x1]
      %v53 = vlaneseq
      %v54 = vand.u32 %v53, 127
      %vm55 = vcmp.lt.s32.totalorder %v54, 8
      %v56 = vsel %vm55, 1, 0
      %v57 = vcvt.s32.f32 %v56
      %v58 = vlaneseq
      %v59 = vshrl.u32 %v58, 7
      %v60 = vsub.s32 0, %v59
      %v61 = vrot.slane %v51, %v60
      %v62 = vlaneseq
      %v63 = vshrl.u32 %v62, 7
      %v64 = vsub.s32 0, %v63
      %v65 = vrot.slane %v52, %v64
      %vm66 = vcmp.eq.s32.totalorder %v50, %v61
      %vm67 = vcmp.eq.s32.totalorder %v50, %v65
      %v68 = vsel %vm66, 1, 0
      %v69 = vsel %vm67, 1, 0
      %v70 = vcvt.s32.f32 %v68
      %v71 = vcvt.s32.f32 %v69
      %v72 = vrot.slane %v47, 4
      %v73 = vmax.f32 %v47, %v72
      %v74 = vrot.slane %v73, 2
      %v75 = vmax.f32 %v73, %v74
      %v76 = vrot.slane %v75, 1
      %v77 = vmax.f32 %v75, %v76
      %v78 = vrot.slane %v48, 4
      %v79 = vmax.f32 %v48, %v78
      %v80 = vrot.slane %v79, 2
      %v81 = vmax.f32 %v79, %v80
      %v82 = vrot.slane %v81, 1
      %v83 = vmax.f32 %v81, %v82
      %v84 = vsub.f32 %v47, %v77
      %v85 = vsub.f32 %v48, %v83
      %v86 = vmul.f32 %v84, 1.442695
      %v87 = vpow.pop %v86
      %v88 = vmul.f32 %v85, 1.442695
      %v89 = vpow.pop %v88
      %v90 = vrot.slane %v87, 4
      %v91 = vadd.f32 %v87, %v90
      %v92 = vrot.slane %v91, 2
      %v93 = vadd.f32 %v91, %v92
      %v94 = vrot.slane %v93, 1
      %v95 = vadd.f32 %v93, %v94
      %v96 = vrot.slane %v89, 4
      %v97 = vadd.f32 %v89, %v96
      %v98 = vrot.slane %v97, 2
      %v99 = vadd.f32 %v97, %v98
      %v100 = vrot.slane %v99, 1
      %v101 = vadd.f32 %v99, %v100
      %v102 = vlog2.pop %v95
      %v103 = vmul.f32 %v102, 0.6931472
      %v104 = vlog2.pop %v101
      %v105 = vmul.f32 %v104, 0.6931472
      %v106 = vadd.f32 %v103, %v77
      %v107 = vadd.f32 %v105, %v83
      %v108 = vmul.f32 %v70, %v47
      %v109 = vmul.f32 %v71, %v48
      %v110 = vrot.slane %v108, 4
      %v111 = vadd.f32 %v108, %v110
      %v112 = vrot.slane %v111, 2
      %v113 = vadd.f32 %v111, %v112
      %v114 = vrot.slane %v113, 1
      %v115 = vadd.f32 %v113, %v114
      %v116 = vrot.slane %v109, 4
      %v117 = vadd.f32 %v109, %v116
      %v118 = vrot.slane %v117, 2
      %v119 = vadd.f32 %v117, %v118
      %v120 = vrot.slane %v119, 1
      %v121 = vadd.f32 %v119, %v120
      %vm122 = vcmp.eq.s32.totalorder %v51, 4
      %vm123 = vcmp.eq.s32.totalorder %v52, 4
      %v124 = vsel %vm122, 0.1, 1.0
      %v125 = vsel %vm123, 0.1, 1.0
      %v126 = vmul.f32 %v124, %v57
      %v127 = vmul.f32 %v125, %v57
      %v128 = vsub.f32 %v106, %v115
      %v129 = vsub.f32 %v107, %v121
      %v130 = vmul.f32 %v126, %v128
      %v131 = vmul.f32 %v127, %v129
      %vm132 = vcmask 1040384
      %v133 = vsel %vm132, %v130, 0.0
      %v134 = vsel %vm132, %v131, 0.0
      %v135 = vadd.f32 %v133, %v134
      %136 = vadd.xlane.f32.xlu0 %v135
      %v137 = vpop.xlane.xlu0 %136
      %v138 = vrot.slane %v137, 4
      %v139 = vadd.f32 %v137, %v138
      %v140 = vrot.slane %v139, 2
      %v141 = vadd.f32 %v139, %v140
      %v142 = vrot.slane %v141, 1
      %v143 = vadd.f32 %v141, %v142
      %s144 = vtos %v143
      %v145 = vsel %vm132, %v126, 0.0
      %v146 = vsel %vm132, %v127, 0.0
      %v147 = vadd.f32 %v145, %v146
      %148 = vadd.xlane.f32.xlu0 %v147
      %v149 = vpop.xlane.xlu0 %148
      %v150 = vrot.slane %v149, 4
      %v151 = vadd.f32 %v149, %v150
      %v152 = vrot.slane %v151, 2
      %v153 = vadd.f32 %v151, %v152
      %v154 = vrot.slane %v153, 1
      %v155 = vadd.f32 %v153, %v154
      %s156 = vtos %v155
      %v157 = vstv %s156
      %v158 = vrcp.pop %v157
      %s159 = vtos %v158
      %s160 = smul.f32 %s144, %s159
      %s161 = scalar_lea.smem [#allocation5], 0
      %162 = sst [smem:[%s161]] %s160
      %vm163 = vcmp.lt.s32.totalorder %v50, 4
      %v164 = vsel %vm163, %v47, -1e+30
      %v165 = vsel %vm163, %v48, -1e+30
      %v166 = vrot.slane %v164, 4
      %v167 = vmax.f32 %v164, %v166
      %v168 = vrot.slane %v167, 2
      %v169 = vmax.f32 %v167, %v168
      %v170 = vrot.slane %v169, 1
      %v171 = vmax.f32 %v169, %v170
      %v172 = vrot.slane %v165, 4
      %v173 = vmax.f32 %v165, %v172
      %v174 = vrot.slane %v173, 2
      %v175 = vmax.f32 %v173, %v174
      %v176 = vrot.slane %v175, 1
      %v177 = vmax.f32 %v175, %v176
      %vm178 = vcmp.eq.s32.totalorder %v50, 4
      %v179 = vsel %vm178, %v47, 0.0
      %v180 = vsel %vm178, %v48, 0.0
      %v181 = vrot.slane %v179, 4
      %v182 = vadd.f32 %v179, %v181
      %v183 = vrot.slane %v182, 2
      %v184 = vadd.f32 %v182, %v183
      %v185 = vrot.slane %v184, 1
      %v186 = vadd.f32 %v184, %v185
      %v187 = vrot.slane %v180, 4
      %v188 = vadd.f32 %v180, %v187
      %v189 = vrot.slane %v188, 2
      %v190 = vadd.f32 %v188, %v189
      %v191 = vrot.slane %v190, 1
      %v192 = vadd.f32 %v190, %v191
      %vm193 = vcmp.ge.f32.partialorder %v171, %v186
      %vm194 = vcmp.ge.f32.partialorder %v177, %v192
      %v195 = vsel %vm193, %v57, 0.0
      %v196 = vsel %vm194, %v57, 0.0
      %197 = vadd.xlane.f32.xlu0 %v195
      %v198 = vpop.xlane.xlu0 %197
      %199 = vadd.xlane.f32.xlu0 %v196
      %v200 = vpop.xlane.xlu0 %199
      %v201 = vld [vmem:[%s2] sm:$0x1]
      %v202 = vld [vmem:[%s2 + $0x1] sm:$0x1]
      %v203 = vsub.f32 %v198, %v201
      %v204 = vsub.f32 %v200, %v202
      %v205 = vand.u32 2147483647, %v203
      %v206 = vand.u32 2147483647, %v204
      %vm207 = vcmask 0
      %v208 = vsel %vm207, %v205, 0.0
      %v209 = vsel %vm207, %v206, 0.0
      %v210 = vadd.f32 %v208, %v209
      %211 = vadd.xlane.f32.xlu0 %v210
      %v212 = vpop.xlane.xlu0 %211
      %v213 = vrot.slane %v212, 4
      %v214 = vadd.f32 %v212, %v213
      %v215 = vrot.slane %v214, 2
      %v216 = vadd.f32 %v214, %v215
      %v217 = vrot.slane %v216, 1
      %v218 = vadd.f32 %v216, %v217
      %s219 = vtos %v218
      %v220 = vrcp.pop 2.0
      %s221 = vtos %v220
      %s222 = smul.f32 %s219, %s221
      %s223 = scalar_lea.smem [#allocation5], 1
      %224 = sst [smem:[%s223]] %s222
      %v225 = vld [vmem:[%s3] sm:$0xff]
      %v226 = vld [vmem:[%s4] sm:$0xff]
      %v227 = vsub.f32 %v225, %v226
      %v228 = vand.u32 2147483647, %v227
      %229 = vadd.xlane.f32.xlu0 %v228
      %v230 = vpop.xlane.xlu0 %229
      %v231 = vrot.slane %v230, 4
      %v232 = vadd.f32 %v230, %v231
      %v233 = vrot.slane %v232, 2
      %v234 = vadd.f32 %v232, %v233
      %v235 = vrot.slane %v234, 1
      %v236 = vadd.f32 %v234, %v235
      %s237 = vtos %v236
      %s238 = sld [smem:[#allocation4]]
      %s239 = smax.f32 %s238, 1.0
      %v240 = vstv %s239
      %v241 = vrcp.pop %v240
      %s242 = vtos %v241
      %s243 = smul.f32 %s237, %s242
      %s244 = scalar_lea.smem [#allocation5], 2
      %245 = sst [smem:[%s244]] %s243
      %v246 = vld [vmem:[%s5] sm:$0xff]
      %v247 = vld [vmem:[%s6] sm:$0xff]
      %v248 = vsub.f32 0.0, %v246
      %v249 = vmul.f32 %v248, 1.442695
      %v250 = vpow.pop %v249
      %v251 = vadd.f32 %v250, 1.0
      %v252 = vrcp.pop %v251
      %v253 = vsub.f32 1.0, %v252
      %v254 = vmul.f32 %v253, %v247
      %v255 = vsub.f32 1.0, %v247
      %v256 = vmul.f32 %v252, %v255
      %v257 = vadd.f32 %v254, %v256
      %v258 = vmul.f32 %v247, 0.25
      %v259 = vmul.f32 %v255, 0.75
      %v260 = vadd.f32 %v258, %v259
      %v261 = vmul.f32 %v257, %v257
      %v262 = vmul.f32 %v260, %v261
      %v263 = vmax.f32 %v246, 0.0
      %v264 = vmul.f32 %v246, %v247
      %v265 = vsub.f32 %v263, %v264
      %v266 = vand.u32 2147483647, %v246
      %v267 = vsub.f32 0.0, %v266
      %v268 = vmul.f32 %v267, 1.442695
      %v269 = vpow.pop %v268
      %v270 = vadd.f32 %v269, 1.0
      %v271 = vlog2.pop %v270
      %v272 = vmul.f32 %v271, 0.6931472
      %v273 = vadd.f32 %v265, %v272
      %v274 = vmul.f32 %v273, %v262
      %275 = vadd.xlane.f32.xlu0 %v274
      %v276 = vpop.xlane.xlu0 %275
      %v277 = vrot.slane %v276, 4
      %v278 = vadd.f32 %v276, %v277
      %v279 = vrot.slane %v278, 2
      %v280 = vadd.f32 %v278, %v279
      %v281 = vrot.slane %v280, 1
      %v282 = vadd.f32 %v280, %v281
      %s283 = vtos %v282
      %s284 = scalar_lea.smem [#allocation5], 3
      %285 = sst [smem:[%s284]] %s283
      %s286 = scalar_lea.smem [#allocation5], 5
      %287 = sst [smem:[%s286]] 0.0
      %s288 = scalar_lea.smem [#allocation5], 6
      %289 = sst [smem:[%s288]] 0.0
      %s290 = scalar_lea.smem [#allocation5], 7
      %291 = sst [smem:[%s290]] 0.0
      %s292 = scalar_lea.smem [#allocation2], 0
      %293 = sst [smem:[%s292]] 0.0
    $region49: #{tpu_custom_call.1} parent=1 // pred_fallthru
      _
    %s294 = smul.u32 0, 256
    %p295 = scmp.lt.s32.totalorder %s294, %s42
    // Predicated region
    $region50: #{tpu_custom_call.1} parent=1 // pred_check
      %p296 = pneg %p295
    $region51: #{tpu_custom_call.1} parent=1 // pred_check_branch
      %298 = sbr.rel (%p296) target = $region53
    $region52: #{tpu_custom_call.1} parent=1 // pred_region
      %v299 = vld [vmem:[%s7] sm:$0xf]
      %v300 = vld [vmem:[%s7 + $0x4] sm:$0xf]
      %v301 = vld [vmem:[%s7 + $0x8] sm:$0xf]
      %v302 = vld [vmem:[%s7 + $0xc] sm:$0xf]
      %v303 = vld [vmem:[%s7 + $0x10] sm:$0xf]
      %v304 = vld [vmem:[%s7 + $0x14] sm:$0xf]
      %v305 = vld [vmem:[%s7 + $0x18] sm:$0xf]
      %v306 = vld [vmem:[%s7 + $0x1c] sm:$0xf]
      %v307 = vld [vmem:[%s7 + $0x20] sm:$0xf]
      %v308 = vld [vmem:[%s7 + $0x24] sm:$0xf]
      %v309 = vld [vmem:[%s7 + $0x28] sm:$0xf]
      %v310 = vld [vmem:[%s7 + $0x2c] sm:$0xf]
      %v311 = vld [vmem:[%s7 + $0x30] sm:$0xf]
      %v312 = vld [vmem:[%s7 + $0x34] sm:$0xf]
      %v313 = vld [vmem:[%s7 + $0x38] sm:$0xf]
      %v314 = vld [vmem:[%s7 + $0x3c] sm:$0xf]
      %v315 = vld [vmem:[%s7 + $0x40] sm:$0xf]
      %v316 = vld [vmem:[%s7 + $0x44] sm:$0xf]
      %v317 = vld [vmem:[%s7 + $0x48] sm:$0xf]
      %v318 = vld [vmem:[%s7 + $0x4c] sm:$0xf]
      %v319 = vld [vmem:[%s7 + $0x50] sm:$0xf]
      %v320 = vld [vmem:[%s7 + $0x54] sm:$0xf]
      %v321 = vld [vmem:[%s7 + $0x58] sm:$0xf]
      %v322 = vld [vmem:[%s7 + $0x5c] sm:$0xf]
      %v323 = vld [vmem:[%s7 + $0x60] sm:$0xf]
      %v324 = vld [vmem:[%s7 + $0x64] sm:$0xf]
      %v325 = vld [vmem:[%s7 + $0x68] sm:$0xf]
      %v326 = vld [vmem:[%s7 + $0x6c] sm:$0xf]
      %v327 = vld [vmem:[%s7 + $0x70] sm:$0xf]
      %v328 = vld [vmem:[%s7 + $0x74] sm:$0xf]
      %v329 = vld [vmem:[%s7 + $0x78] sm:$0xf]
      %v330 = vld [vmem:[%s7 + $0x7c] sm:$0xf]
      %s331 = sshra.s32 %s294, 3
      %s332 = sand.u32 %s294, 7
      %s333 = smul.addr %s331, 4
      %s334 = scalar_lea.vmem %s7, %s333
      %v335 = vld [vmem:[%s334] sm:$0xf]
      %v336 = vld [vmem:[%s334 + $0x4] sm:$0xf]
      %v337 = vld [vmem:[%s334 + $0x8] sm:$0xf]
      %v338 = vld [vmem:[%s334 + $0xc] sm:$0xf]
      %v339 = vld [vmem:[%s334 + $0x10] sm:$0xf]
      %v340 = vld [vmem:[%s334 + $0x14] sm:$0xf]
      %v341 = vld [vmem:[%s334 + $0x18] sm:$0xf]
      %v342 = vld [vmem:[%s334 + $0x1c] sm:$0xf]
      %v343 = vld [vmem:[%s334 + $0x20] sm:$0xf]
      %v344 = vld [vmem:[%s334 + $0x24] sm:$0xf]
      %v345 = vld [vmem:[%s334 + $0x28] sm:$0xf]
      %v346 = vld [vmem:[%s334 + $0x2c] sm:$0xf]
      %v347 = vld [vmem:[%s334 + $0x30] sm:$0xf]
      %v348 = vld [vmem:[%s334 + $0x34] sm:$0xf]
      %v349 = vld [vmem:[%s334 + $0x38] sm:$0xf]
      %v350 = vld [vmem:[%s334 + $0x3c] sm:$0xf]
      %v351 = vld [vmem:[%s334 + $0x40] sm:$0xf]
      %v352 = vld [vmem:[%s334 + $0x44] sm:$0xf]
      %v353 = vld [vmem:[%s334 + $0x48] sm:$0xf]
      %v354 = vld [vmem:[%s334 + $0x4c] sm:$0xf]
      %v355 = vld [vmem:[%s334 + $0x50] sm:$0xf]
      %v356 = vld [vmem:[%s334 + $0x54] sm:$0xf]
      %v357 = vld [vmem:[%s334 + $0x58] sm:$0xf]
      %v358 = vld [vmem:[%s334 + $0x5c] sm:$0xf]
      %v359 = vld [vmem:[%s334 + $0x60] sm:$0xf]
      %v360 = vld [vmem:[%s334 + $0x64] sm:$0xf]
      %v361 = vld [vmem:[%s334 + $0x68] sm:$0xf]
      %v362 = vld [vmem:[%s334 + $0x6c] sm:$0xf]
      %v363 = vld [vmem:[%s334 + $0x70] sm:$0xf]
      %v364 = vld [vmem:[%s334 + $0x74] sm:$0xf]
      %v365 = vld [vmem:[%s334 + $0x78] sm:$0xf]
      %v366 = vld [vmem:[%s334 + $0x7c] sm:$0xf]
      %v399 = vunpack.c.l.b16 %v335
      %v400 = vunpack.c.l.b16 %v336
      %v401 = vunpack.c.l.b16 %v337
      %v402 = vunpack.c.l.b16 %v338
      %v403 = vunpack.c.l.b16 %v339
      %v404 = vunpack.c.l.b16 %v340
      %v405 = vunpack.c.l.b16 %v341
      %v406 = vunpack.c.l.b16 %v342
      %v407 = vunpack.c.l.b16 %v343
      %v408 = vunpack.c.l.b16 %v344
      %v409 = vunpack.c.l.b16 %v345
      %v410 = vunpack.c.l.b16 %v346
      %v411 = vunpack.c.l.b16 %v347
      %v412 = vunpack.c.l.b16 %v348
      %v413 = vunpack.c.l.b16 %v349
      %v414 = vunpack.c.l.b16 %v350
      %v415 = vunpack.c.l.b16 %v351
      %v416 = vunpack.c.l.b16 %v352
      %v417 = vunpack.c.l.b16 %v353
      %v418 = vunpack.c.l.b16 %v354
      %v419 = vunpack.c.l.b16 %v355
      %v420 = vunpack.c.l.b16 %v356
      %v421 = vunpack.c.l.b16 %v357
      %v422 = vunpack.c.l.b16 %v358
      %v423 = vunpack.c.l.b16 %v359
      %v424 = vunpack.c.l.b16 %v360
      %v425 = vunpack.c.l.b16 %v361
      %v426 = vunpack.c.l.b16 %v362
      %v427 = vunpack.c.l.b16 %v363
      %v428 = vunpack.c.l.b16 %v364
      %v429 = vunpack.c.l.b16 %v365
      %v430 = vunpack.c.l.b16 %v366
      %v431 = vpack.c.b16 %v400, %v399
      %v432 = vpack.c.b16 %v402, %v401
      %v433 = vpack.c.b16 %v404, %v403
      %v434 = vpack.c.b16 %v406, %v405
      %v435 = vpack.c.b16 %v408, %v407
      %v436 = vpack.c.b16 %v410, %v409
      %v437 = vpack.c.b16 %v412, %v411
      %v438 = vpack.c.b16 %v414, %v413
      %v439 = vpack.c.b16 %v416, %v415
      %v440 = vpack.c.b16 %v418, %v417
      %v441 = vpack.c.b16 %v420, %v419
      %v442 = vpack.c.b16 %v422, %v421
      %v443 = vpack.c.b16 %v424, %v423
      %v444 = vpack.c.b16 %v426, %v425
      %v445 = vpack.c.b16 %v428, %v427
      %v446 = vpack.c.b16 %v430, %v429
      %v479 = vunpack.c.l.b16 %v299
      %v480 = vunpack.c.l.b16 %v300
      %v481 = vunpack.c.l.b16 %v301
      %v482 = vunpack.c.l.b16 %v302
      %v483 = vunpack.c.l.b16 %v303
      %v484 = vunpack.c.l.b16 %v304
      %v485 = vunpack.c.l.b16 %v305
      %v486 = vunpack.c.l.b16 %v306
      %v487 = vunpack.c.l.b16 %v307
      %v488 = vunpack.c.l.b16 %v308
      %v489 = vunpack.c.l.b16 %v309
      %v490 = vunpack.c.l.b16 %v310
      %v491 = vunpack.c.l.b16 %v311
      %v492 = vunpack.c.l.b16 %v312
      %v493 = vunpack.c.l.b16 %v313
      %v494 = vunpack.c.l.b16 %v314
      %v495 = vunpack.c.l.b16 %v315
      %v496 = vunpack.c.l.b16 %v316
      %v497 = vunpack.c.l.b16 %v317
      %v498 = vunpack.c.l.b16 %v318
      %v499 = vunpack.c.l.b16 %v319
      %v500 = vunpack.c.l.b16 %v320
      %v501 = vunpack.c.l.b16 %v321
      %v502 = vunpack.c.l.b16 %v322
      %v503 = vunpack.c.l.b16 %v323
      %v504 = vunpack.c.l.b16 %v324
      %v505 = vunpack.c.l.b16 %v325
      %v506 = vunpack.c.l.b16 %v326
      %v507 = vunpack.c.l.b16 %v327
      %v508 = vunpack.c.l.b16 %v328
      %v509 = vunpack.c.l.b16 %v329
      %v510 = vunpack.c.l.b16 %v330
      %v511 = vpack.c.b16 %v480, %v479
      %v512 = vpack.c.b16 %v482, %v481
      %v513 = vpack.c.b16 %v484, %v483
      %v514 = vpack.c.b16 %v486, %v485
      %v515 = vpack.c.b16 %v488, %v487
      %v516 = vpack.c.b16 %v490, %v489
      %v517 = vpack.c.b16 %v492, %v491
      %v518 = vpack.c.b16 %v494, %v493
      %v519 = vpack.c.b16 %v496, %v495
      %v520 = vpack.c.b16 %v498, %v497
      %v521 = vpack.c.b16 %v500, %v499
      %v522 = vpack.c.b16 %v502, %v501
      %v523 = vpack.c.b16 %v504, %v503
      %v524 = vpack.c.b16 %v506, %v505
      %v525 = vpack.c.b16 %v508, %v507
      %v526 = vpack.c.b16 %v510, %v509
      %vm527 = vcmask 261120
      %v529 = vsel %vm527, %v431, 0
      %v532 = vsel %vm527, %v432, 0
      %v535 = vsel %vm527, %v433, 0
      %v538 = vsel %vm527, %v434, 0
      %v541 = vsel %vm527, %v435, 0
      %v544 = vsel %vm527, %v436, 0
      %v547 = vsel %vm527, %v437, 0
      %v550 = vsel %vm527, %v438, 0
      %v553 = vsel %vm527, %v439, 0
      %v556 = vsel %vm527, %v440, 0
      %v559 = vsel %vm527, %v441, 0
      %v562 = vsel %vm527, %v442, 0
      %v565 = vsel %vm527, %v443, 0
      %v568 = vsel %vm527, %v444, 0
      %v571 = vsel %vm527, %v445, 0
      %v574 = vsel %vm527, %v446, 0
      %v577 = vsel %vm527, %v511, 0
      %v580 = vsel %vm527, %v512, 0
      %v583 = vsel %vm527, %v513, 0
      %v586 = vsel %vm527, %v514, 0
      %v589 = vsel %vm527, %v515, 0
      %v592 = vsel %vm527, %v516, 0
      %v595 = vsel %vm527, %v517, 0
      %v598 = vsel %vm527, %v518, 0
      %v601 = vsel %vm527, %v519, 0
      %v604 = vsel %vm527, %v520, 0
      %v607 = vsel %vm527, %v521, 0
      %v610 = vsel %vm527, %v522, 0
      %v613 = vsel %vm527, %v523, 0
      %v616 = vsel %vm527, %v524, 0
      %v619 = vsel %vm527, %v525, 0
      %v622 = vsel %vm527, %v526, 0
      %624 = vmatprep.subr.bf16.mxu0 0
      %625 = vmatpush1.bf16.xpose.msra.mxu0 %v598
      %626 = vmatprep.subr.bf16.mxu0 0
      %627 = vmatpush1.bf16.xpose.msra.mxu0 %v595
      %628 = vmatprep.subr.bf16.mxu0 0
      %629 = vmatpush1.bf16.xpose.msra.mxu0 %v592
      %630 = vmatprep.subr.bf16.mxu0 0
      %631 = vmatpush1.bf16.xpose.msra.mxu0 %v589
      %632 = vmatprep.subr.bf16.mxu0 0
      %633 = vmatpush1.bf16.xpose.msra.mxu0 %v586
      %634 = vmatprep.subr.bf16.mxu0 0
      %635 = vmatpush1.bf16.xpose.msra.mxu0 %v583
      %636 = vmatprep.subr.bf16.mxu0 0
      %637 = vmatpush1.bf16.xpose.msra.mxu0 %v580
      %638 = vmatprep.subr.bf16.mxu0 0
      %639 = vmatpush1.bf16.xpose.msra.mxu0 %v577
      %640 = vmatprep.subr.bf16.mxu0 0
      %641 = vmatpush2.bf16.xpose.msra.mxu0 %v622
      %642 = vmatprep.subr.bf16.mxu0 0
      %643 = vmatpush2.bf16.xpose.msra.mxu0 %v619
      %644 = vmatprep.subr.bf16.mxu0 0
      %645 = vmatpush2.bf16.xpose.msra.mxu0 %v616
      %646 = vmatprep.subr.bf16.mxu0 0
      %647 = vmatpush2.bf16.xpose.msra.mxu0 %v613
      %648 = vmatprep.subr.bf16.mxu0 0
      %649 = vmatpush2.bf16.xpose.msra.mxu0 %v610
      %650 = vmatprep.subr.bf16.mxu0 0
      %651 = vmatpush2.bf16.xpose.msra.mxu0 %v607
      %652 = vmatprep.subr.bf16.mxu0 0
      %653 = vmatpush2.bf16.xpose.msra.mxu0 %v604
      %654 = vmatprep.subr.bf16.mxu0 0
      %655 = vmatpush2.bf16.xpose.msra.mxu0 %v601
      %656 = vmatprep.mubr.bf16.mxu0 0
      %657 = vmatmul.mubr.bf16.gmra.mxu0 %v529
      %v658 = vpop.f32.mrf.mxu0
      %v659 = vadd.f32 0.0, %v658
      %v660 = vpop.f32.mrf.mxu0
      %v661 = vadd.f32 0.0, %v660
      %v662 = vpop.f32.mrf.mxu0
      %v663 = vadd.f32 0.0, %v662
      %v664 = vpop.f32.mrf.mxu0
      %v665 = vadd.f32 0.0, %v664
      %666 = vmatprep.mubr.bf16.mxu0 0
      %667 = vmatmul.mubr.bf16.gmra.mxu0 %v532
      %v668 = vpop.f32.mrf.mxu0
      %v669 = vadd.f32 0.0, %v668
      %v670 = vpop.f32.mrf.mxu0
      %v671 = vadd.f32 0.0, %v670
      %v672 = vpop.f32.mrf.mxu0
      %v673 = vadd.f32 0.0, %v672
      %v674 = vpop.f32.mrf.mxu0
      %v675 = vadd.f32 0.0, %v674
      %676 = vmatprep.mubr.bf16.mxu0 0
      %677 = vmatmul.mubr.bf16.gmra.mxu0 %v535
      %v678 = vpop.f32.mrf.mxu0
      %v679 = vadd.f32 0.0, %v678
      %v680 = vpop.f32.mrf.mxu0
      %v681 = vadd.f32 0.0, %v680
      %v682 = vpop.f32.mrf.mxu0
      %v683 = vadd.f32 0.0, %v682
      %v684 = vpop.f32.mrf.mxu0
      %v685 = vadd.f32 0.0, %v684
      %686 = vmatprep.mubr.bf16.mxu0 0
      %687 = vmatmul.mubr.bf16.gmra.mxu0 %v538
      %v688 = vpop.f32.mrf.mxu0
      %v689 = vadd.f32 0.0, %v688
      %v690 = vpop.f32.mrf.mxu0
      %v691 = vadd.f32 0.0, %v690
      %v692 = vpop.f32.mrf.mxu0
      %v693 = vadd.f32 0.0, %v692
      %v694 = vpop.f32.mrf.mxu0
      %v695 = vadd.f32 0.0, %v694
      %696 = vmatprep.mubr.bf16.mxu0 0
      %697 = vmatmul.mubr.bf16.gmra.mxu0 %v541
      %v698 = vpop.f32.mrf.mxu0
      %v699 = vadd.f32 0.0, %v698
      %v700 = vpop.f32.mrf.mxu0
      %v701 = vadd.f32 0.0, %v700
      %v702 = vpop.f32.mrf.mxu0
      %v703 = vadd.f32 0.0, %v702
      %v704 = vpop.f32.mrf.mxu0
      %v705 = vadd.f32 0.0, %v704
      %706 = vmatprep.mubr.bf16.mxu0 0
      %707 = vmatmul.mubr.bf16.gmra.mxu0 %v544
      %v708 = vpop.f32.mrf.mxu0
      %v709 = vadd.f32 0.0, %v708
      %v710 = vpop.f32.mrf.mxu0
      %v711 = vadd.f32 0.0, %v710
      %v712 = vpop.f32.mrf.mxu0
      %v713 = vadd.f32 0.0, %v712
      %v714 = vpop.f32.mrf.mxu0
      %v715 = vadd.f32 0.0, %v714
      %716 = vmatprep.mubr.bf16.mxu0 0
      %717 = vmatmul.mubr.bf16.gmra.mxu0 %v547
      %v718 = vpop.f32.mrf.mxu0
      %v719 = vadd.f32 0.0, %v718
      %v720 = vpop.f32.mrf.mxu0
      %v721 = vadd.f32 0.0, %v720
      %v722 = vpop.f32.mrf.mxu0
      %v723 = vadd.f32 0.0, %v722
      %v724 = vpop.f32.mrf.mxu0
      %v725 = vadd.f32 0.0, %v724
      %726 = vmatprep.mubr.bf16.mxu0 0
      %727 = vmatmul.mubr.bf16.gmra.mxu0 %v550
      %v728 = vpop.f32.mrf.mxu0
      %v729 = vadd.f32 0.0, %v728
      %v730 = vpop.f32.mrf.mxu0
      %v731 = vadd.f32 0.0, %v730
      %v732 = vpop.f32.mrf.mxu0
      %v733 = vadd.f32 0.0, %v732
      %v734 = vpop.f32.mrf.mxu0
      %v735 = vadd.f32 0.0, %v734
      %736 = vmatprep.mubr.bf16.mxu0 0
      %737 = vmatmul.mubr.bf16.gmra.mxu0 %v553
      %v738 = vpop.f32.mrf.mxu0
      %v739 = vadd.f32 0.0, %v738
      %v740 = vpop.f32.mrf.mxu0
      %v741 = vadd.f32 0.0, %v740
      %v742 = vpop.f32.mrf.mxu0
      %v743 = vadd.f32 0.0, %v742
      %v744 = vpop.f32.mrf.mxu0
      %v745 = vadd.f32 0.0, %v744
      %746 = vmatprep.mubr.bf16.mxu0 0
      %747 = vmatmul.mubr.bf16.gmra.mxu0 %v556
      %v748 = vpop.f32.mrf.mxu0
      %v749 = vadd.f32 0.0, %v748
      %v750 = vpop.f32.mrf.mxu0
      %v751 = vadd.f32 0.0, %v750
      %v752 = vpop.f32.mrf.mxu0
      %v753 = vadd.f32 0.0, %v752
      %v754 = vpop.f32.mrf.mxu0
      %v755 = vadd.f32 0.0, %v754
      %756 = vmatprep.mubr.bf16.mxu0 0
      %757 = vmatmul.mubr.bf16.gmra.mxu0 %v559
      %v758 = vpop.f32.mrf.mxu0
      %v759 = vadd.f32 0.0, %v758
      %v760 = vpop.f32.mrf.mxu0
      %v761 = vadd.f32 0.0, %v760
      %v762 = vpop.f32.mrf.mxu0
      %v763 = vadd.f32 0.0, %v762
      %v764 = vpop.f32.mrf.mxu0
      %v765 = vadd.f32 0.0, %v764
      %766 = vmatprep.mubr.bf16.mxu0 0
      %767 = vmatmul.mubr.bf16.gmra.mxu0 %v562
      %v768 = vpop.f32.mrf.mxu0
      %v769 = vadd.f32 0.0, %v768
      %v770 = vpop.f32.mrf.mxu0
      %v771 = vadd.f32 0.0, %v770
      %v772 = vpop.f32.mrf.mxu0
      %v773 = vadd.f32 0.0, %v772
      %v774 = vpop.f32.mrf.mxu0
      %v775 = vadd.f32 0.0, %v774
      %776 = vmatprep.mubr.bf16.mxu0 0
      %777 = vmatmul.mubr.bf16.gmra.mxu0 %v565
      %v778 = vpop.f32.mrf.mxu0
      %v779 = vadd.f32 0.0, %v778
      %v780 = vpop.f32.mrf.mxu0
      %v781 = vadd.f32 0.0, %v780
      %v782 = vpop.f32.mrf.mxu0
      %v783 = vadd.f32 0.0, %v782
      %v784 = vpop.f32.mrf.mxu0
      %v785 = vadd.f32 0.0, %v784
      %786 = vmatprep.mubr.bf16.mxu0 0
      %787 = vmatmul.mubr.bf16.gmra.mxu0 %v568
      %v788 = vpop.f32.mrf.mxu0
      %v789 = vadd.f32 0.0, %v788
      %v790 = vpop.f32.mrf.mxu0
      %v791 = vadd.f32 0.0, %v790
      %v792 = vpop.f32.mrf.mxu0
      %v793 = vadd.f32 0.0, %v792
      %v794 = vpop.f32.mrf.mxu0
      %v795 = vadd.f32 0.0, %v794
      %796 = vmatprep.mubr.bf16.mxu0 0
      %797 = vmatmul.mubr.bf16.gmra.mxu0 %v571
      %v798 = vpop.f32.mrf.mxu0
      %v799 = vadd.f32 0.0, %v798
      %v800 = vpop.f32.mrf.mxu0
      %v801 = vadd.f32 0.0, %v800
      %v802 = vpop.f32.mrf.mxu0
      %v803 = vadd.f32 0.0, %v802
      %v804 = vpop.f32.mrf.mxu0
      %v805 = vadd.f32 0.0, %v804
      %806 = vmatprep.mubr.bf16.mxu0 0
      %807 = vmatmul.mubr.bf16.gmra.mxu0 %v574
      %v808 = vpop.f32.mrf.mxu0
      %v809 = vadd.f32 0.0, %v808
      %v810 = vpop.f32.mrf.mxu0
      %v811 = vadd.f32 0.0, %v810
      %v812 = vpop.f32.mrf.mxu0
      %v813 = vadd.f32 0.0, %v812
      %v814 = vpop.f32.mrf.mxu0
      %v815 = vadd.f32 0.0, %v814
      %816 = vdwg.mxu0
      %v817 = vunpack.c.l.bf16 %v335
      %v818 = vunpack.c.l.bf16 %v336
      %v819 = vunpack.c.l.bf16 %v337
      %v820 = vunpack.c.l.bf16 %v338
      %v821 = vunpack.c.l.bf16 %v339
      %v822 = vunpack.c.l.bf16 %v340
      %v823 = vunpack.c.l.bf16 %v341
      %v824 = vunpack.c.l.bf16 %v342
      %v825 = vunpack.c.l.bf16 %v343
      %v826 = vunpack.c.l.bf16 %v344
      %v827 = vunpack.c.l.bf16 %v345
      %v828 = vunpack.c.l.bf16 %v346
      %v829 = vunpack.c.l.bf16 %v347
      %v830 = vunpack.c.l.bf16 %v348
      %v831 = vunpack.c.l.bf16 %v349
      %v832 = vunpack.c.l.bf16 %v350
      %v833 = vunpack.c.l.bf16 %v351
      %v834 = vunpack.c.l.bf16 %v352
      %v835 = vunpack.c.l.bf16 %v353
      %v836 = vunpack.c.l.bf16 %v354
      %v837 = vunpack.c.l.bf16 %v355
      %v838 = vunpack.c.l.bf16 %v356
      %v839 = vunpack.c.l.bf16 %v357
      %v840 = vunpack.c.l.bf16 %v358
      %v841 = vunpack.c.l.bf16 %v359
      %v842 = vunpack.c.l.bf16 %v360
      %v843 = vunpack.c.l.bf16 %v361
      %v844 = vunpack.c.l.bf16 %v362
      %v845 = vunpack.c.l.bf16 %v363
      %v846 = vunpack.c.l.bf16 %v364
      %v847 = vunpack.c.l.bf16 %v365
      %v848 = vunpack.c.l.bf16 %v366
      %v849 = vmul.f32 %v817, %v817
      %v850 = vmul.f32 %v818, %v818
      %v851 = vmul.f32 %v819, %v819
      %v852 = vmul.f32 %v820, %v820
      %v853 = vmul.f32 %v821, %v821
      %v854 = vmul.f32 %v822, %v822
      %v855 = vmul.f32 %v823, %v823
      %v856 = vmul.f32 %v824, %v824
      %v857 = vmul.f32 %v825, %v825
      %v858 = vmul.f32 %v826, %v826
      %v859 = vmul.f32 %v827, %v827
      %v860 = vmul.f32 %v828, %v828
      %v861 = vmul.f32 %v829, %v829
      %v862 = vmul.f32 %v830, %v830
      %v863 = vmul.f32 %v831, %v831
      %v864 = vmul.f32 %v832, %v832
      %v865 = vmul.f32 %v833, %v833
      %v866 = vmul.f32 %v834, %v834
      %v867 = vmul.f32 %v835, %v835
      %v868 = vmul.f32 %v836, %v836
      %v869 = vmul.f32 %v837, %v837
      %v870 = vmul.f32 %v838, %v838
      %v871 = vmul.f32 %v839, %v839
      %v872 = vmul.f32 %v840, %v840
      %v873 = vmul.f32 %v841, %v841
      %v874 = vmul.f32 %v842, %v842
      %v875 = vmul.f32 %v843, %v843
      %v876 = vmul.f32 %v844, %v844
      %v877 = vmul.f32 %v845, %v845
      %v878 = vmul.f32 %v846, %v846
      %v879 = vmul.f32 %v847, %v847
      %v880 = vmul.f32 %v848, %v848
      %v881 = vsel %vm527, %v849, 0.0
      %882 = vadd.xlane.f32.xlu0 %v881
      %v883 = vpop.xlane.xlu0 %882
      %v884 = vsel %vm527, %v850, 0.0
      %885 = vadd.xlane.f32.xlu0 %v884
      %v886 = vpop.xlane.xlu0 %885
      %v887 = vsel %vm527, %v851, 0.0
      %888 = vadd.xlane.f32.xlu0 %v887
      %v889 = vpop.xlane.xlu0 %888
      %v890 = vsel %vm527, %v852, 0.0
      %891 = vadd.xlane.f32.xlu0 %v890
      %v892 = vpop.xlane.xlu0 %891
      %v893 = vsel %vm527, %v853, 0.0
      %894 = vadd.xlane.f32.xlu0 %v893
      %v895 = vpop.xlane.xlu0 %894
      %v896 = vsel %vm527, %v854, 0.0
      %897 = vadd.xlane.f32.xlu0 %v896
      %v898 = vpop.xlane.xlu0 %897
      %v899 = vsel %vm527, %v855, 0.0
      %900 = vadd.xlane.f32.xlu0 %v899
      %v901 = vpop.xlane.xlu0 %900
      %v902 = vsel %vm527, %v856, 0.0
      %903 = vadd.xlane.f32.xlu0 %v902
      %v904 = vpop.xlane.xlu0 %903
      %v905 = vsel %vm527, %v857, 0.0
      %906 = vadd.xlane.f32.xlu0 %v905
      %v907 = vpop.xlane.xlu0 %906
      %v908 = vsel %vm527, %v858, 0.0
      %909 = vadd.xlane.f32.xlu0 %v908
      %v910 = vpop.xlane.xlu0 %909
      %v911 = vsel %vm527, %v859, 0.0
      %912 = vadd.xlane.f32.xlu0 %v911
      %v913 = vpop.xlane.xlu0 %912
      %v914 = vsel %vm527, %v860, 0.0
      %915 = vadd.xlane.f32.xlu0 %v914
      %v916 = vpop.xlane.xlu0 %915
      %v917 = vsel %vm527, %v861, 0.0
      %918 = vadd.xlane.f32.xlu0 %v917
      %v919 = vpop.xlane.xlu0 %918
      %v920 = vsel %vm527, %v862, 0.0
      %921 = vadd.xlane.f32.xlu0 %v920
      %v922 = vpop.xlane.xlu0 %921
      %v923 = vsel %vm527, %v863, 0.0
      %924 = vadd.xlane.f32.xlu0 %v923
      %v925 = vpop.xlane.xlu0 %924
      %v926 = vsel %vm527, %v864, 0.0
      %927 = vadd.xlane.f32.xlu0 %v926
      %v928 = vpop.xlane.xlu0 %927
      %v929 = vsel %vm527, %v865, 0.0
      %930 = vadd.xlane.f32.xlu0 %v929
      %v931 = vpop.xlane.xlu0 %930
      %v932 = vsel %vm527, %v866, 0.0
      %933 = vadd.xlane.f32.xlu0 %v932
      %v934 = vpop.xlane.xlu0 %933
      %v935 = vsel %vm527, %v867, 0.0
      %936 = vadd.xlane.f32.xlu0 %v935
      %v937 = vpop.xlane.xlu0 %936
      %v938 = vsel %vm527, %v868, 0.0
      %939 = vadd.xlane.f32.xlu0 %v938
      %v940 = vpop.xlane.xlu0 %939
      %v941 = vsel %vm527, %v869, 0.0
      %942 = vadd.xlane.f32.xlu0 %v941
      %v943 = vpop.xlane.xlu0 %942
      %v944 = vsel %vm527, %v870, 0.0
      %945 = vadd.xlane.f32.xlu0 %v944
      %v946 = vpop.xlane.xlu0 %945
      %v947 = vsel %vm527, %v871, 0.0
      %948 = vadd.xlane.f32.xlu0 %v947
      %v949 = vpop.xlane.xlu0 %948
      %v950 = vsel %vm527, %v872, 0.0
      %951 = vadd.xlane.f32.xlu0 %v950
      %v952 = vpop.xlane.xlu0 %951
      %v953 = vsel %vm527, %v873, 0.0
      %954 = vadd.xlane.f32.xlu0 %v953
      %v955 = vpop.xlane.xlu0 %954
      %v956 = vsel %vm527, %v874, 0.0
      %957 = vadd.xlane.f32.xlu0 %v956
      %v958 = vpop.xlane.xlu0 %957
      %v959 = vsel %vm527, %v875, 0.0
      %960 = vadd.xlane.f32.xlu0 %v959
      %v961 = vpop.xlane.xlu0 %960
      %v962 = vsel %vm527, %v876, 0.0
      %963 = vadd.xlane.f32.xlu0 %v962
      %v964 = vpop.xlane.xlu0 %963
      %v965 = vsel %vm527, %v877, 0.0
      %966 = vadd.xlane.f32.xlu0 %v965
      %v967 = vpop.xlane.xlu0 %966
      %v968 = vsel %vm527, %v878, 0.0
      %969 = vadd.xlane.f32.xlu0 %v968
      %v970 = vpop.xlane.xlu0 %969
      %v971 = vsel %vm527, %v879, 0.0
      %972 = vadd.xlane.f32.xlu0 %v971
      %v973 = vpop.xlane.xlu0 %972
      %v974 = vsel %vm527, %v880, 0.0
      %975 = vadd.xlane.f32.xlu0 %v974
      %v976 = vpop.xlane.xlu0 %975
      %v977 = vld [vmem:[%s8] sm:$0x3]
      %v979 = vlaneseq
      %v980 = vshrl.u32 %v979, 7
      %v981 = vsub.s32 0, %v980
      %v982 = vrot.slane %v977, %v981
      %v983 = vlaneseq
      %v984 = vshrl.u32 %v983, 7
      %v985 = vsub.s32 1, %v984
      %v986 = vrot.slane %v977, %v985
      %v989 = vadd.f32 %v883, %v982
      %v990 = vadd.f32 %v883, %v986
      %v991 = vadd.f32 %v886, %v982
      %v992 = vadd.f32 %v886, %v986
      %v993 = vadd.f32 %v889, %v982
      %v994 = vadd.f32 %v889, %v986
      %v995 = vadd.f32 %v892, %v982
      %v996 = vadd.f32 %v892, %v986
      %v997 = vadd.f32 %v895, %v982
      %v998 = vadd.f32 %v895, %v986
      %v999 = vadd.f32 %v898, %v982
      %v1000 = vadd.f32 %v898, %v986
      %v1001 = vadd.f32 %v901, %v982
      %v1002 = vadd.f32 %v901, %v986
      %v1003 = vadd.f32 %v904, %v982
      %v1004 = vadd.f32 %v904, %v986
      %v1005 = vadd.f32 %v907, %v982
      %v1006 = vadd.f32 %v907, %v986
      %v1007 = vadd.f32 %v910, %v982
      %v1008 = vadd.f32 %v910, %v986
      %v1009 = vadd.f32 %v913, %v982
      %v1010 = vadd.f32 %v913, %v986
      %v1011 = vadd.f32 %v916, %v982
      %v1012 = vadd.f32 %v916, %v986
      %v1013 = vadd.f32 %v919, %v982
      %v1014 = vadd.f32 %v919, %v986
      %v1015 = vadd.f32 %v922, %v982
      %v1016 = vadd.f32 %v922, %v986
      %v1017 = vadd.f32 %v925, %v982
      %v1018 = vadd.f32 %v925, %v986
      %v1019 = vadd.f32 %v928, %v982
      %v1020 = vadd.f32 %v928, %v986
      %v1021 = vadd.f32 %v931, %v982
      %v1022 = vadd.f32 %v931, %v986
      %v1023 = vadd.f32 %v934, %v982
      %v1024 = vadd.f32 %v934, %v986
      %v1025 = vadd.f32 %v937, %v982
      %v1026 = vadd.f32 %v937, %v986
      %v1027 = vadd.f32 %v940, %v982
      %v1028 = vadd.f32 %v940, %v986
      %v1029 = vadd.f32 %v943, %v982
      %v1030 = vadd.f32 %v943, %v986
      %v1031 = vadd.f32 %v946, %v982
      %v1032 = vadd.f32 %v946, %v986
      %v1033 = vadd.f32 %v949, %v982
      %v1034 = vadd.f32 %v949, %v986
      %v1035 = vadd.f32 %v952, %v982
      %v1036 = vadd.f32 %v952, %v986
      %v1037 = vadd.f32 %v955, %v982
      %v1038 = vadd.f32 %v955, %v986
      %v1039 = vadd.f32 %v958, %v982
      %v1040 = vadd.f32 %v958, %v986
      %v1041 = vadd.f32 %v961, %v982
      %v1042 = vadd.f32 %v961, %v986
      %v1043 = vadd.f32 %v964, %v982
      %v1044 = vadd.f32 %v964, %v986
      %v1045 = vadd.f32 %v967, %v982
      %v1046 = vadd.f32 %v967, %v986
      %v1047 = vadd.f32 %v970, %v982
      %v1048 = vadd.f32 %v970, %v986
      %v1049 = vadd.f32 %v973, %v982
      %v1050 = vadd.f32 %v973, %v986
      %v1051 = vadd.f32 %v976, %v982
      %v1052 = vadd.f32 %v976, %v986
      %v1053 = vmul.f32 %v659, 2.0
      %v1054 = vmul.f32 %v661, 2.0
      %v1055 = vmul.f32 %v663, 2.0
      %v1056 = vmul.f32 %v665, 2.0
      %v1057 = vmul.f32 %v669, 2.0
      %v1058 = vmul.f32 %v671, 2.0
      %v1059 = vmul.f32 %v673, 2.0
      %v1060 = vmul.f32 %v675, 2.0
      %v1061 = vmul.f32 %v679, 2.0
      %v1062 = vmul.f32 %v681, 2.0
      %v1063 = vmul.f32 %v683, 2.0
      %v1064 = vmul.f32 %v685, 2.0
      %v1065 = vmul.f32 %v689, 2.0
      %v1066 = vmul.f32 %v691, 2.0
      %v1067 = vmul.f32 %v693, 2.0
      %v1068 = vmul.f32 %v695, 2.0
      %v1069 = vmul.f32 %v699, 2.0
      %v1070 = vmul.f32 %v701, 2.0
      %v1071 = vmul.f32 %v703, 2.0
      %v1072 = vmul.f32 %v705, 2.0
      %v1073 = vmul.f32 %v709, 2.0
      %v1074 = vmul.f32 %v711, 2.0
      %v1075 = vmul.f32 %v713, 2.0
      %v1076 = vmul.f32 %v715, 2.0
      %v1077 = vmul.f32 %v719, 2.0
      %v1078 = vmul.f32 %v721, 2.0
      %v1079 = vmul.f32 %v723, 2.0
      %v1080 = vmul.f32 %v725, 2.0
      %v1081 = vmul.f32 %v729, 2.0
      %v1082 = vmul.f32 %v731, 2.0
      %v1083 = vmul.f32 %v733, 2.0
      %v1084 = vmul.f32 %v735, 2.0
      %v1085 = vmul.f32 %v739, 2.0
      %v1086 = vmul.f32 %v741, 2.0
      %v1087 = vmul.f32 %v743, 2.0
      %v1088 = vmul.f32 %v745, 2.0
      %v1089 = vmul.f32 %v749, 2.0
      %v1090 = vmul.f32 %v751, 2.0
      %v1091 = vmul.f32 %v753, 2.0
      %v1092 = vmul.f32 %v755, 2.0
      %v1093 = vmul.f32 %v759, 2.0
      %v1094 = vmul.f32 %v761, 2.0
      %v1095 = vmul.f32 %v763, 2.0
      %v1096 = vmul.f32 %v765, 2.0
      %v1097 = vmul.f32 %v769, 2.0
      %v1098 = vmul.f32 %v771, 2.0
      %v1099 = vmul.f32 %v773, 2.0
      %v1100 = vmul.f32 %v775, 2.0
      %v1101 = vmul.f32 %v779, 2.0
      %v1102 = vmul.f32 %v781, 2.0
      %v1103 = vmul.f32 %v783, 2.0
      %v1104 = vmul.f32 %v785, 2.0
      %v1105 = vmul.f32 %v789, 2.0
      %v1106 = vmul.f32 %v791, 2.0
      %v1107 = vmul.f32 %v793, 2.0
      %v1108 = vmul.f32 %v795, 2.0
      %v1109 = vmul.f32 %v799, 2.0
      %v1110 = vmul.f32 %v801, 2.0
      %v1111 = vmul.f32 %v803, 2.0
      %v1112 = vmul.f32 %v805, 2.0
      %v1113 = vmul.f32 %v809, 2.0
      %v1114 = vmul.f32 %v811, 2.0
      %v1115 = vmul.f32 %v813, 2.0
      %v1116 = vmul.f32 %v815, 2.0
      %v1117 = vsub.f32 %v989, %v1053
      %v1118 = vsub.f32 %v990, %v1054
      %v1119 = vsub.f32 %v991, %v1055
      %v1120 = vsub.f32 %v992, %v1056
      %v1121 = vsub.f32 %v993, %v1057
      %v1122 = vsub.f32 %v994, %v1058
      %v1123 = vsub.f32 %v995, %v1059
      %v1124 = vsub.f32 %v996, %v1060
      %v1125 = vsub.f32 %v997, %v1061
      %v1126 = vsub.f32 %v998, %v1062
      %v1127 = vsub.f32 %v999, %v1063
      %v1128 = vsub.f32 %v1000, %v1064
      %v1129 = vsub.f32 %v1001, %v1065
      %v1130 = vsub.f32 %v1002, %v1066
      %v1131 = vsub.f32 %v1003, %v1067
      %v1132 = vsub.f32 %v1004, %v1068
      %v1133 = vsub.f32 %v1005, %v1069
      %v1134 = vsub.f32 %v1006, %v1070
      %v1135 = vsub.f32 %v1007, %v1071
      %v1136 = vsub.f32 %v1008, %v1072
      %v1137 = vsub.f32 %v1009, %v1073
      %v1138 = vsub.f32 %v1010, %v1074
      %v1139 = vsub.f32 %v1011, %v1075
      %v1140 = vsub.f32 %v1012, %v1076
      %v1141 = vsub.f32 %v1013, %v1077
      %v1142 = vsub.f32 %v1014, %v1078
      %v1143 = vsub.f32 %v1015, %v1079
      %v1144 = vsub.f32 %v1016, %v1080
      %v1145 = vsub.f32 %v1017, %v1081
      %v1146 = vsub.f32 %v1018, %v1082
      %v1147 = vsub.f32 %v1019, %v1083
      %v1148 = vsub.f32 %v1020, %v1084
      %v1149 = vsub.f32 %v1021, %v1085
      %v1150 = vsub.f32 %v1022, %v1086
      %v1151 = vsub.f32 %v1023, %v1087
      %v1152 = vsub.f32 %v1024, %v1088
      %v1153 = vsub.f32 %v1025, %v1089
      %v1154 = vsub.f32 %v1026, %v1090
      %v1155 = vsub.f32 %v1027, %v1091
      %v1156 = vsub.f32 %v1028, %v1092
      %v1157 = vsub.f32 %v1029, %v1093
      %v1158 = vsub.f32 %v1030, %v1094
      %v1159 = vsub.f32 %v1031, %v1095
      %v1160 = vsub.f32 %v1032, %v1096
      %v1161 = vsub.f32 %v1033, %v1097
      %v1162 = vsub.f32 %v1034, %v1098
      %v1163 = vsub.f32 %v1035, %v1099
      %v1164 = vsub.f32 %v1036, %v1100
      %v1165 = vsub.f32 %v1037, %v1101
      %v1166 = vsub.f32 %v1038, %v1102
      %v1167 = vsub.f32 %v1039, %v1103
      %v1168 = vsub.f32 %v1040, %v1104
      %v1169 = vsub.f32 %v1041, %v1105
      %v1170 = vsub.f32 %v1042, %v1106
      %v1171 = vsub.f32 %v1043, %v1107
      %v1172 = vsub.f32 %v1044, %v1108
      %v1173 = vsub.f32 %v1045, %v1109
      %v1174 = vsub.f32 %v1046, %v1110
      %v1175 = vsub.f32 %v1047, %v1111
      %v1176 = vsub.f32 %v1048, %v1112
      %v1177 = vsub.f32 %v1049, %v1113
      %v1178 = vsub.f32 %v1050, %v1114
      %v1179 = vsub.f32 %v1051, %v1115
      %v1180 = vsub.f32 %v1052, %v1116
      %v1181 = vmax.f32 %v1117, 0.0
      %v1182 = vmax.f32 %v1118, 0.0
      %v1183 = vmax.f32 %v1119, 0.0
      %v1184 = vmax.f32 %v1120, 0.0
      %v1185 = vmax.f32 %v1121, 0.0
      %v1186 = vmax.f32 %v1122, 0.0
      %v1187 = vmax.f32 %v1123, 0.0
      %v1188 = vmax.f32 %v1124, 0.0
      %v1189 = vmax.f32 %v1125, 0.0
      %v1190 = vmax.f32 %v1126, 0.0
      %v1191 = vmax.f32 %v1127, 0.0
      %v1192 = vmax.f32 %v1128, 0.0
      %v1193 = vmax.f32 %v1129, 0.0
      %v1194 = vmax.f32 %v1130, 0.0
      %v1195 = vmax.f32 %v1131, 0.0
      %v1196 = vmax.f32 %v1132, 0.0
      %v1197 = vmax.f32 %v1133, 0.0
      %v1198 = vmax.f32 %v1134, 0.0
      %v1199 = vmax.f32 %v1135, 0.0
      %v1200 = vmax.f32 %v1136, 0.0
      %v1201 = vmax.f32 %v1137, 0.0
      %v1202 = vmax.f32 %v1138, 0.0
      %v1203 = vmax.f32 %v1139, 0.0
      %v1204 = vmax.f32 %v1140, 0.0
      %v1205 = vmax.f32 %v1141, 0.0
      %v1206 = vmax.f32 %v1142, 0.0
      %v1207 = vmax.f32 %v1143, 0.0
      %v1208 = vmax.f32 %v1144, 0.0
      %v1209 = vmax.f32 %v1145, 0.0
      %v1210 = vmax.f32 %v1146, 0.0
      %v1211 = vmax.f32 %v1147, 0.0
      %v1212 = vmax.f32 %v1148, 0.0
      %v1213 = vmax.f32 %v1149, 0.0
      %v1214 = vmax.f32 %v1150, 0.0
      %v1215 = vmax.f32 %v1151, 0.0
      %v1216 = vmax.f32 %v1152, 0.0
      %v1217 = vmax.f32 %v1153, 0.0
      %v1218 = vmax.f32 %v1154, 0.0
      %v1219 = vmax.f32 %v1155, 0.0
      %v1220 = vmax.f32 %v1156, 0.0
      %v1221 = vmax.f32 %v1157, 0.0
      %v1222 = vmax.f32 %v1158, 0.0
      %v1223 = vmax.f32 %v1159, 0.0
      %v1224 = vmax.f32 %v1160, 0.0
      %v1225 = vmax.f32 %v1161, 0.0
      %v1226 = vmax.f32 %v1162, 0.0
      %v1227 = vmax.f32 %v1163, 0.0
      %v1228 = vmax.f32 %v1164, 0.0
      %v1229 = vmax.f32 %v1165, 0.0
      %v1230 = vmax.f32 %v1166, 0.0
      %v1231 = vmax.f32 %v1167, 0.0
      %v1232 = vmax.f32 %v1168, 0.0
      %v1233 = vmax.f32 %v1169, 0.0
      %v1234 = vmax.f32 %v1170, 0.0
      %v1235 = vmax.f32 %v1171, 0.0
      %v1236 = vmax.f32 %v1172, 0.0
      %v1237 = vmax.f32 %v1173, 0.0
      %v1238 = vmax.f32 %v1174, 0.0
      %v1239 = vmax.f32 %v1175, 0.0
      %v1240 = vmax.f32 %v1176, 0.0
      %v1241 = vmax.f32 %v1177, 0.0
      %v1242 = vmax.f32 %v1178, 0.0
      %v1243 = vmax.f32 %v1179, 0.0
      %v1244 = vmax.f32 %v1180, 0.0
      %v1245 = vrsqrt.pop %v1181
      %v1246 = vmul.f32 %v1181, %v1245
      %vm1247 = vcmp.eq.f32.partialorder %v1181, inf
      %v1248 = vsel %vm1247, %v1181, %v1246
      %vm1249 = vcmp.eq.f32.partialorder %v1181, 0.0
      %v1250 = vand.u32 %v1181, 2147483648
      %v1251 = vsel %vm1249, %v1250, %v1248
      %v1252 = vrsqrt.pop %v1182
      %v1253 = vmul.f32 %v1182, %v1252
      %vm1254 = vcmp.eq.f32.partialorder %v1182, inf
      %v1255 = vsel %vm1254, %v1182, %v1253
      %vm1256 = vcmp.eq.f32.partialorder %v1182, 0.0
      %v1257 = vand.u32 %v1182, 2147483648
      %v1258 = vsel %vm1256, %v1257, %v1255
      %v1259 = vrsqrt.pop %v1183
      %v1260 = vmul.f32 %v1183, %v1259
      %vm1261 = vcmp.eq.f32.partialorder %v1183, inf
      %v1262 = vsel %vm1261, %v1183, %v1260
      %vm1263 = vcmp.eq.f32.partialorder %v1183, 0.0
      %v1264 = vand.u32 %v1183, 2147483648
      %v1265 = vsel %vm1263, %v1264, %v1262
      %v1266 = vrsqrt.pop %v1184
      %v1267 = vmul.f32 %v1184, %v1266
      %vm1268 = vcmp.eq.f32.partialorder %v1184, inf
      %v1269 = vsel %vm1268, %v1184, %v1267
      %vm1270 = vcmp.eq.f32.partialorder %v1184, 0.0
      %v1271 = vand.u32 %v1184, 2147483648
      %v1272 = vsel %vm1270, %v1271, %v1269
      %v1273 = vrsqrt.pop %v1185
      %v1274 = vmul.f32 %v1185, %v1273
      %vm1275 = vcmp.eq.f32.partialorder %v1185, inf
      %v1276 = vsel %vm1275, %v1185, %v1274
      %vm1277 = vcmp.eq.f32.partialorder %v1185, 0.0
      %v1278 = vand.u32 %v1185, 2147483648
      %v1279 = vsel %vm1277, %v1278, %v1276
      %v1280 = vrsqrt.pop %v1186
      %v1281 = vmul.f32 %v1186, %v1280
      %vm1282 = vcmp.eq.f32.partialorder %v1186, inf
      %v1283 = vsel %vm1282, %v1186, %v1281
      %vm1284 = vcmp.eq.f32.partialorder %v1186, 0.0
      %v1285 = vand.u32 %v1186, 2147483648
      %v1286 = vsel %vm1284, %v1285, %v1283
      %v1287 = vrsqrt.pop %v1187
      %v1288 = vmul.f32 %v1187, %v1287
      %vm1289 = vcmp.eq.f32.partialorder %v1187, inf
      %v1290 = vsel %vm1289, %v1187, %v1288
      %vm1291 = vcmp.eq.f32.partialorder %v1187, 0.0
      %v1292 = vand.u32 %v1187, 2147483648
      %v1293 = vsel %vm1291, %v1292, %v1290
      %v1294 = vrsqrt.pop %v1188
      %v1295 = vmul.f32 %v1188, %v1294
      %vm1296 = vcmp.eq.f32.partialorder %v1188, inf
      %v1297 = vsel %vm1296, %v1188, %v1295
      %vm1298 = vcmp.eq.f32.partialorder %v1188, 0.0
      %v1299 = vand.u32 %v1188, 2147483648
      %v1300 = vsel %vm1298, %v1299, %v1297
      %v1301 = vrsqrt.pop %v1189
      %v1302 = vmul.f32 %v1189, %v1301
      %vm1303 = vcmp.eq.f32.partialorder %v1189, inf
      %v1304 = vsel %vm1303, %v1189, %v1302
      %vm1305 = vcmp.eq.f32.partialorder %v1189, 0.0
      %v1306 = vand.u32 %v1189, 2147483648
      %v1307 = vsel %vm1305, %v1306, %v1304
      %v1308 = vrsqrt.pop %v1190
      %v1309 = vmul.f32 %v1190, %v1308
      %vm1310 = vcmp.eq.f32.partialorder %v1190, inf
      %v1311 = vsel %vm1310, %v1190, %v1309
      %vm1312 = vcmp.eq.f32.partialorder %v1190, 0.0
      %v1313 = vand.u32 %v1190, 2147483648
      %v1314 = vsel %vm1312, %v1313, %v1311
      %v1315 = vrsqrt.pop %v1191
      %v1316 = vmul.f32 %v1191, %v1315
      %vm1317 = vcmp.eq.f32.partialorder %v1191, inf
      %v1318 = vsel %vm1317, %v1191, %v1316
      %vm1319 = vcmp.eq.f32.partialorder %v1191, 0.0
      %v1320 = vand.u32 %v1191, 2147483648
      %v1321 = vsel %vm1319, %v1320, %v1318
      %v1322 = vrsqrt.pop %v1192
      %v1323 = vmul.f32 %v1192, %v1322
      %vm1324 = vcmp.eq.f32.partialorder %v1192, inf
      %v1325 = vsel %vm1324, %v1192, %v1323
      %vm1326 = vcmp.eq.f32.partialorder %v1192, 0.0
      %v1327 = vand.u32 %v1192, 2147483648
      %v1328 = vsel %vm1326, %v1327, %v1325
      %v1329 = vrsqrt.pop %v1193
      %v1330 = vmul.f32 %v1193, %v1329
      %vm1331 = vcmp.eq.f32.partialorder %v1193, inf
      %v1332 = vsel %vm1331, %v1193, %v1330
      %vm1333 = vcmp.eq.f32.partialorder %v1193, 0.0
      %v1334 = vand.u32 %v1193, 2147483648
      %v1335 = vsel %vm1333, %v1334, %v1332
      %v1336 = vrsqrt.pop %v1194
      %v1337 = vmul.f32 %v1194, %v1336
      %vm1338 = vcmp.eq.f32.partialorder %v1194, inf
      %v1339 = vsel %vm1338, %v1194, %v1337
      %vm1340 = vcmp.eq.f32.partialorder %v1194, 0.0
      %v1341 = vand.u32 %v1194, 2147483648
      %v1342 = vsel %vm1340, %v1341, %v1339
      %v1343 = vrsqrt.pop %v1195
      %v1344 = vmul.f32 %v1195, %v1343
      %vm1345 = vcmp.eq.f32.partialorder %v1195, inf
      %v1346 = vsel %vm1345, %v1195, %v1344
      %vm1347 = vcmp.eq.f32.partialorder %v1195, 0.0
      %v1348 = vand.u32 %v1195, 2147483648
      %v1349 = vsel %vm1347, %v1348, %v1346
      %v1350 = vrsqrt.pop %v1196
      %v1351 = vmul.f32 %v1196, %v1350
      %vm1352 = vcmp.eq.f32.partialorder %v1196, inf
      %v1353 = vsel %vm1352, %v1196, %v1351
      %vm1354 = vcmp.eq.f32.partialorder %v1196, 0.0
      %v1355 = vand.u32 %v1196, 2147483648
      %v1356 = vsel %vm1354, %v1355, %v1353
      %v1357 = vrsqrt.pop %v1197
      %v1358 = vmul.f32 %v1197, %v1357
      %vm1359 = vcmp.eq.f32.partialorder %v1197, inf
      %v1360 = vsel %vm1359, %v1197, %v1358
      %vm1361 = vcmp.eq.f32.partialorder %v1197, 0.0
      %v1362 = vand.u32 %v1197, 2147483648
      %v1363 = vsel %vm1361, %v1362, %v1360
      %v1364 = vrsqrt.pop %v1198
      %v1365 = vmul.f32 %v1198, %v1364
      %vm1366 = vcmp.eq.f32.partialorder %v1198, inf
      %v1367 = vsel %vm1366, %v1198, %v1365
      %vm1368 = vcmp.eq.f32.partialorder %v1198, 0.0
      %v1369 = vand.u32 %v1198, 2147483648
      %v1370 = vsel %vm1368, %v1369, %v1367
      %v1371 = vrsqrt.pop %v1199
      %v1372 = vmul.f32 %v1199, %v1371
      %vm1373 = vcmp.eq.f32.partialorder %v1199, inf
      %v1374 = vsel %vm1373, %v1199, %v1372
      %vm1375 = vcmp.eq.f32.partialorder %v1199, 0.0
      %v1376 = vand.u32 %v1199, 2147483648
      %v1377 = vsel %vm1375, %v1376, %v1374
      %v1378 = vrsqrt.pop %v1200
      %v1379 = vmul.f32 %v1200, %v1378
      %vm1380 = vcmp.eq.f32.partialorder %v1200, inf
      %v1381 = vsel %vm1380, %v1200, %v1379
      %vm1382 = vcmp.eq.f32.partialorder %v1200, 0.0
      %v1383 = vand.u32 %v1200, 2147483648
      %v1384 = vsel %vm1382, %v1383, %v1381
      %v1385 = vrsqrt.pop %v1201
      %v1386 = vmul.f32 %v1201, %v1385
      %vm1387 = vcmp.eq.f32.partialorder %v1201, inf
      %v1388 = vsel %vm1387, %v1201, %v1386
      %vm1389 = vcmp.eq.f32.partialorder %v1201, 0.0
      %v1390 = vand.u32 %v1201, 2147483648
      %v1391 = vsel %vm1389, %v1390, %v1388
      %v1392 = vrsqrt.pop %v1202
      %v1393 = vmul.f32 %v1202, %v1392
      %vm1394 = vcmp.eq.f32.partialorder %v1202, inf
      %v1395 = vsel %vm1394, %v1202, %v1393
      %vm1396 = vcmp.eq.f32.partialorder %v1202, 0.0
      %v1397 = vand.u32 %v1202, 2147483648
      %v1398 = vsel %vm1396, %v1397, %v1395
      %v1399 = vrsqrt.pop %v1203
      %v1400 = vmul.f32 %v1203, %v1399
      %vm1401 = vcmp.eq.f32.partialorder %v1203, inf
      %v1402 = vsel %vm1401, %v1203, %v1400
      %vm1403 = vcmp.eq.f32.partialorder %v1203, 0.0
      %v1404 = vand.u32 %v1203, 2147483648
      %v1405 = vsel %vm1403, %v1404, %v1402
      %v1406 = vrsqrt.pop %v1204
      %v1407 = vmul.f32 %v1204, %v1406
      %vm1408 = vcmp.eq.f32.partialorder %v1204, inf
      %v1409 = vsel %vm1408, %v1204, %v1407
      %vm1410 = vcmp.eq.f32.partialorder %v1204, 0.0
      %v1411 = vand.u32 %v1204, 2147483648
      %v1412 = vsel %vm1410, %v1411, %v1409
      %v1413 = vrsqrt.pop %v1205
      %v1414 = vmul.f32 %v1205, %v1413
      %vm1415 = vcmp.eq.f32.partialorder %v1205, inf
      %v1416 = vsel %vm1415, %v1205, %v1414
      %vm1417 = vcmp.eq.f32.partialorder %v1205, 0.0
      %v1418 = vand.u32 %v1205, 2147483648
      %v1419 = vsel %vm1417, %v1418, %v1416
      %v1420 = vrsqrt.pop %v1206
      %v1421 = vmul.f32 %v1206, %v1420
      %vm1422 = vcmp.eq.f32.partialorder %v1206, inf
      %v1423 = vsel %vm1422, %v1206, %v1421
      %vm1424 = vcmp.eq.f32.partialorder %v1206, 0.0
      %v1425 = vand.u32 %v1206, 2147483648
      %v1426 = vsel %vm1424, %v1425, %v1423
      %v1427 = vrsqrt.pop %v1207
      %v1428 = vmul.f32 %v1207, %v1427
      %vm1429 = vcmp.eq.f32.partialorder %v1207, inf
      %v1430 = vsel %vm1429, %v1207, %v1428
      %vm1431 = vcmp.eq.f32.partialorder %v1207, 0.0
      %v1432 = vand.u32 %v1207, 2147483648
      %v1433 = vsel %vm1431, %v1432, %v1430
      %v1434 = vrsqrt.pop %v1208
      %v1435 = vmul.f32 %v1208, %v1434
      %vm1436 = vcmp.eq.f32.partialorder %v1208, inf
      %v1437 = vsel %vm1436, %v1208, %v1435
      %vm1438 = vcmp.eq.f32.partialorder %v1208, 0.0
      %v1439 = vand.u32 %v1208, 2147483648
      %v1440 = vsel %vm1438, %v1439, %v1437
      %v1441 = vrsqrt.pop %v1209
      %v1442 = vmul.f32 %v1209, %v1441
      %vm1443 = vcmp.eq.f32.partialorder %v1209, inf
      %v1444 = vsel %vm1443, %v1209, %v1442
      %vm1445 = vcmp.eq.f32.partialorder %v1209, 0.0
      %v1446 = vand.u32 %v1209, 2147483648
      %v1447 = vsel %vm1445, %v1446, %v1444
      %v1448 = vrsqrt.pop %v1210
      %v1449 = vmul.f32 %v1210, %v1448
      %vm1450 = vcmp.eq.f32.partialorder %v1210, inf
      %v1451 = vsel %vm1450, %v1210, %v1449
      %vm1452 = vcmp.eq.f32.partialorder %v1210, 0.0
      %v1453 = vand.u32 %v1210, 2147483648
      %v1454 = vsel %vm1452, %v1453, %v1451
      %v1455 = vrsqrt.pop %v1211
      %v1456 = vmul.f32 %v1211, %v1455
      %vm1457 = vcmp.eq.f32.partialorder %v1211, inf
      %v1458 = vsel %vm1457, %v1211, %v1456
      %vm1459 = vcmp.eq.f32.partialorder %v1211, 0.0
      %v1460 = vand.u32 %v1211, 2147483648
      %v1461 = vsel %vm1459, %v1460, %v1458
      %v1462 = vrsqrt.pop %v1212
      %v1463 = vmul.f32 %v1212, %v1462
      %vm1464 = vcmp.eq.f32.partialorder %v1212, inf
      %v1465 = vsel %vm1464, %v1212, %v1463
      %vm1466 = vcmp.eq.f32.partialorder %v1212, 0.0
      %v1467 = vand.u32 %v1212, 2147483648
      %v1468 = vsel %vm1466, %v1467, %v1465
      %v1469 = vrsqrt.pop %v1213
      %v1470 = vmul.f32 %v1213, %v1469
      %vm1471 = vcmp.eq.f32.partialorder %v1213, inf
      %v1472 = vsel %vm1471, %v1213, %v1470
      %vm1473 = vcmp.eq.f32.partialorder %v1213, 0.0
      %v1474 = vand.u32 %v1213, 2147483648
      %v1475 = vsel %vm1473, %v1474, %v1472
      %v1476 = vrsqrt.pop %v1214
      %v1477 = vmul.f32 %v1214, %v1476
      %vm1478 = vcmp.eq.f32.partialorder %v1214, inf
      %v1479 = vsel %vm1478, %v1214, %v1477
      %vm1480 = vcmp.eq.f32.partialorder %v1214, 0.0
      %v1481 = vand.u32 %v1214, 2147483648
      %v1482 = vsel %vm1480, %v1481, %v1479
      %v1483 = vrsqrt.pop %v1215
      %v1484 = vmul.f32 %v1215, %v1483
      %vm1485 = vcmp.eq.f32.partialorder %v1215, inf
      %v1486 = vsel %vm1485, %v1215, %v1484
      %vm1487 = vcmp.eq.f32.partialorder %v1215, 0.0
      %v1488 = vand.u32 %v1215, 2147483648
      %v1489 = vsel %vm1487, %v1488, %v1486
      %v1490 = vrsqrt.pop %v1216
      %v1491 = vmul.f32 %v1216, %v1490
      %vm1492 = vcmp.eq.f32.partialorder %v1216, inf
      %v1493 = vsel %vm1492, %v1216, %v1491
      %vm1494 = vcmp.eq.f32.partialorder %v1216, 0.0
      %v1495 = vand.u32 %v1216, 2147483648
      %v1496 = vsel %vm1494, %v1495, %v1493
      %v1497 = vrsqrt.pop %v1217
      %v1498 = vmul.f32 %v1217, %v1497
      %vm1499 = vcmp.eq.f32.partialorder %v1217, inf
      %v1500 = vsel %vm1499, %v1217, %v1498
      %vm1501 = vcmp.eq.f32.partialorder %v1217, 0.0
      %v1502 = vand.u32 %v1217, 2147483648
      %v1503 = vsel %vm1501, %v1502, %v1500
      %v1504 = vrsqrt.pop %v1218
      %v1505 = vmul.f32 %v1218, %v1504
      %vm1506 = vcmp.eq.f32.partialorder %v1218, inf
      %v1507 = vsel %vm1506, %v1218, %v1505
      %vm1508 = vcmp.eq.f32.partialorder %v1218, 0.0
      %v1509 = vand.u32 %v1218, 2147483648
      %v1510 = vsel %vm1508, %v1509, %v1507
      %v1511 = vrsqrt.pop %v1219
      %v1512 = vmul.f32 %v1219, %v1511
      %vm1513 = vcmp.eq.f32.partialorder %v1219, inf
      %v1514 = vsel %vm1513, %v1219, %v1512
      %vm1515 = vcmp.eq.f32.partialorder %v1219, 0.0
      %v1516 = vand.u32 %v1219, 2147483648
      %v1517 = vsel %vm1515, %v1516, %v1514
      %v1518 = vrsqrt.pop %v1220
      %v1519 = vmul.f32 %v1220, %v1518
      %vm1520 = vcmp.eq.f32.partialorder %v1220, inf
      %v1521 = vsel %vm1520, %v1220, %v1519
      %vm1522 = vcmp.eq.f32.partialorder %v1220, 0.0
      %v1523 = vand.u32 %v1220, 2147483648
      %v1524 = vsel %vm1522, %v1523, %v1521
      %v1525 = vrsqrt.pop %v1221
      %v1526 = vmul.f32 %v1221, %v1525
      %vm1527 = vcmp.eq.f32.partialorder %v1221, inf
      %v1528 = vsel %vm1527, %v1221, %v1526
      %vm1529 = vcmp.eq.f32.partialorder %v1221, 0.0
      %v1530 = vand.u32 %v1221, 2147483648
      %v1531 = vsel %vm1529, %v1530, %v1528
      %v1532 = vrsqrt.pop %v1222
      %v1533 = vmul.f32 %v1222, %v1532
      %vm1534 = vcmp.eq.f32.partialorder %v1222, inf
      %v1535 = vsel %vm1534, %v1222, %v1533
      %vm1536 = vcmp.eq.f32.partialorder %v1222, 0.0
      %v1537 = vand.u32 %v1222, 2147483648
      %v1538 = vsel %vm1536, %v1537, %v1535
      %v1539 = vrsqrt.pop %v1223
      %v1540 = vmul.f32 %v1223, %v1539
      %vm1541 = vcmp.eq.f32.partialorder %v1223, inf
      %v1542 = vsel %vm1541, %v1223, %v1540
      %vm1543 = vcmp.eq.f32.partialorder %v1223, 0.0
      %v1544 = vand.u32 %v1223, 2147483648
      %v1545 = vsel %vm1543, %v1544, %v1542
      %v1546 = vrsqrt.pop %v1224
      %v1547 = vmul.f32 %v1224, %v1546
      %vm1548 = vcmp.eq.f32.partialorder %v1224, inf
      %v1549 = vsel %vm1548, %v1224, %v1547
      %vm1550 = vcmp.eq.f32.partialorder %v1224, 0.0
      %v1551 = vand.u32 %v1224, 2147483648
      %v1552 = vsel %vm1550, %v1551, %v1549
      %v1553 = vrsqrt.pop %v1225
      %v1554 = vmul.f32 %v1225, %v1553
      %vm1555 = vcmp.eq.f32.partialorder %v1225, inf
      %v1556 = vsel %vm1555, %v1225, %v1554
      %vm1557 = vcmp.eq.f32.partialorder %v1225, 0.0
      %v1558 = vand.u32 %v1225, 2147483648
      %v1559 = vsel %vm1557, %v1558, %v1556
      %v1560 = vrsqrt.pop %v1226
      %v1561 = vmul.f32 %v1226, %v1560
      %vm1562 = vcmp.eq.f32.partialorder %v1226, inf
      %v1563 = vsel %vm1562, %v1226, %v1561
      %vm1564 = vcmp.eq.f32.partialorder %v1226, 0.0
      %v1565 = vand.u32 %v1226, 2147483648
      %v1566 = vsel %vm1564, %v1565, %v1563
      %v1567 = vrsqrt.pop %v1227
      %v1568 = vmul.f32 %v1227, %v1567
      %vm1569 = vcmp.eq.f32.partialorder %v1227, inf
      %v1570 = vsel %vm1569, %v1227, %v1568
      %vm1571 = vcmp.eq.f32.partialorder %v1227, 0.0
      %v1572 = vand.u32 %v1227, 2147483648
      %v1573 = vsel %vm1571, %v1572, %v1570
      %v1574 = vrsqrt.pop %v1228
      %v1575 = vmul.f32 %v1228, %v1574
      %vm1576 = vcmp.eq.f32.partialorder %v1228, inf
      %v1577 = vsel %vm1576, %v1228, %v1575
      %vm1578 = vcmp.eq.f32.partialorder %v1228, 0.0
      %v1579 = vand.u32 %v1228, 2147483648
      %v1580 = vsel %vm1578, %v1579, %v1577
      %v1581 = vrsqrt.pop %v1229
      %v1582 = vmul.f32 %v1229, %v1581
      %vm1583 = vcmp.eq.f32.partialorder %v1229, inf
      %v1584 = vsel %vm1583, %v1229, %v1582
      %vm1585 = vcmp.eq.f32.partialorder %v1229, 0.0
      %v1586 = vand.u32 %v1229, 2147483648
      %v1587 = vsel %vm1585, %v1586, %v1584
      %v1588 = vrsqrt.pop %v1230
      %v1589 = vmul.f32 %v1230, %v1588
      %vm1590 = vcmp.eq.f32.partialorder %v1230, inf
      %v1591 = vsel %vm1590, %v1230, %v1589
      %vm1592 = vcmp.eq.f32.partialorder %v1230, 0.0
      %v1593 = vand.u32 %v1230, 2147483648
      %v1594 = vsel %vm1592, %v1593, %v1591
      %v1595 = vrsqrt.pop %v1231
      %v1596 = vmul.f32 %v1231, %v1595
      %vm1597 = vcmp.eq.f32.partialorder %v1231, inf
      %v1598 = vsel %vm1597, %v1231, %v1596
      %vm1599 = vcmp.eq.f32.partialorder %v1231, 0.0
      %v1600 = vand.u32 %v1231, 2147483648
      %v1601 = vsel %vm1599, %v1600, %v1598
      %v1602 = vrsqrt.pop %v1232
      %v1603 = vmul.f32 %v1232, %v1602
      %vm1604 = vcmp.eq.f32.partialorder %v1232, inf
      %v1605 = vsel %vm1604, %v1232, %v1603
      %vm1606 = vcmp.eq.f32.partialorder %v1232, 0.0
      %v1607 = vand.u32 %v1232, 2147483648
      %v1608 = vsel %vm1606, %v1607, %v1605
      %v1609 = vrsqrt.pop %v1233
      %v1610 = vmul.f32 %v1233, %v1609
      %vm1611 = vcmp.eq.f32.partialorder %v1233, inf
      %v1612 = vsel %vm1611, %v1233, %v1610
      %vm1613 = vcmp.eq.f32.partialorder %v1233, 0.0
      %v1614 = vand.u32 %v1233, 2147483648
      %v1615 = vsel %vm1613, %v1614, %v1612
      %v1616 = vrsqrt.pop %v1234
      %v1617 = vmul.f32 %v1234, %v1616
      %vm1618 = vcmp.eq.f32.partialorder %v1234, inf
      %v1619 = vsel %vm1618, %v1234, %v1617
      %vm1620 = vcmp.eq.f32.partialorder %v1234, 0.0
      %v1621 = vand.u32 %v1234, 2147483648
      %v1622 = vsel %vm1620, %v1621, %v1619
      %v1623 = vrsqrt.pop %v1235
      %v1624 = vmul.f32 %v1235, %v1623
      %vm1625 = vcmp.eq.f32.partialorder %v1235, inf
      %v1626 = vsel %vm1625, %v1235, %v1624
      %vm1627 = vcmp.eq.f32.partialorder %v1235, 0.0
      %v1628 = vand.u32 %v1235, 2147483648
      %v1629 = vsel %vm1627, %v1628, %v1626
      %v1630 = vrsqrt.pop %v1236
      %v1631 = vmul.f32 %v1236, %v1630
      %vm1632 = vcmp.eq.f32.partialorder %v1236, inf
      %v1633 = vsel %vm1632, %v1236, %v1631
      %vm1634 = vcmp.eq.f32.partialorder %v1236, 0.0
      %v1635 = vand.u32 %v1236, 2147483648
      %v1636 = vsel %vm1634, %v1635, %v1633
      %v1637 = vrsqrt.pop %v1237
      %v1638 = vmul.f32 %v1237, %v1637
      %vm1639 = vcmp.eq.f32.partialorder %v1237, inf
      %v1640 = vsel %vm1639, %v1237, %v1638
      %vm1641 = vcmp.eq.f32.partialorder %v1237, 0.0
      %v1642 = vand.u32 %v1237, 2147483648
      %v1643 = vsel %vm1641, %v1642, %v1640
      %v1644 = vrsqrt.pop %v1238
      %v1645 = vmul.f32 %v1238, %v1644
      %vm1646 = vcmp.eq.f32.partialorder %v1238, inf
      %v1647 = vsel %vm1646, %v1238, %v1645
      %vm1648 = vcmp.eq.f32.partialorder %v1238, 0.0
      %v1649 = vand.u32 %v1238, 2147483648
      %v1650 = vsel %vm1648, %v1649, %v1647
      %v1651 = vrsqrt.pop %v1239
      %v1652 = vmul.f32 %v1239, %v1651
      %vm1653 = vcmp.eq.f32.partialorder %v1239, inf
      %v1654 = vsel %vm1653, %v1239, %v1652
      %vm1655 = vcmp.eq.f32.partialorder %v1239, 0.0
      %v1656 = vand.u32 %v1239, 2147483648
      %v1657 = vsel %vm1655, %v1656, %v1654
      %v1658 = vrsqrt.pop %v1240
      %v1659 = vmul.f32 %v1240, %v1658
      %vm1660 = vcmp.eq.f32.partialorder %v1240, inf
      %v1661 = vsel %vm1660, %v1240, %v1659
      %vm1662 = vcmp.eq.f32.partialorder %v1240, 0.0
      %v1663 = vand.u32 %v1240, 2147483648
      %v1664 = vsel %vm1662, %v1663, %v1661
      %v1665 = vrsqrt.pop %v1241
      %v1666 = vmul.f32 %v1241, %v1665
      %vm1667 = vcmp.eq.f32.partialorder %v1241, inf
      %v1668 = vsel %vm1667, %v1241, %v1666
      %vm1669 = vcmp.eq.f32.partialorder %v1241, 0.0
      %v1670 = vand.u32 %v1241, 2147483648
      %v1671 = vsel %vm1669, %v1670, %v1668
      %v1672 = vrsqrt.pop %v1242
      %v1673 = vmul.f32 %v1242, %v1672
      %vm1674 = vcmp.eq.f32.partialorder %v1242, inf
      %v1675 = vsel %vm1674, %v1242, %v1673
      %vm1676 = vcmp.eq.f32.partialorder %v1242, 0.0
      %v1677 = vand.u32 %v1242, 2147483648
      %v1678 = vsel %vm1676, %v1677, %v1675
      %v1679 = vrsqrt.pop %v1243
      %v1680 = vmul.f32 %v1243, %v1679
      %vm1681 = vcmp.eq.f32.partialorder %v1243, inf
      %v1682 = vsel %vm1681, %v1243, %v1680
      %vm1683 = vcmp.eq.f32.partialorder %v1243, 0.0
      %v1684 = vand.u32 %v1243, 2147483648
      %v1685 = vsel %vm1683, %v1684, %v1682
      %v1686 = vrsqrt.pop %v1244
      %v1687 = vmul.f32 %v1244, %v1686
      %vm1688 = vcmp.eq.f32.partialorder %v1244, inf
      %v1689 = vsel %vm1688, %v1244, %v1687
      %vm1690 = vcmp.eq.f32.partialorder %v1244, 0.0
      %v1691 = vand.u32 %v1244, 2147483648
      %v1692 = vsel %vm1690, %v1691, %v1689
      %v1693 = vsub.f32 60.0, %v1251
      %v1694 = vsub.f32 60.0, %v1258
      %v1695 = vsub.f32 60.0, %v1265
      %v1696 = vsub.f32 60.0, %v1272
      %v1697 = vsub.f32 60.0, %v1279
      %v1698 = vsub.f32 60.0, %v1286
      %v1699 = vsub.f32 60.0, %v1293
      %v1700 = vsub.f32 60.0, %v1300
      %v1701 = vsub.f32 60.0, %v1307
      %v1702 = vsub.f32 60.0, %v1314
      %v1703 = vsub.f32 60.0, %v1321
      %v1704 = vsub.f32 60.0, %v1328
      %v1705 = vsub.f32 60.0, %v1335
      %v1706 = vsub.f32 60.0, %v1342
      %v1707 = vsub.f32 60.0, %v1349
      %v1708 = vsub.f32 60.0, %v1356
      %v1709 = vsub.f32 60.0, %v1363
      %v1710 = vsub.f32 60.0, %v1370
      %v1711 = vsub.f32 60.0, %v1377
      %v1712 = vsub.f32 60.0, %v1384
      %v1713 = vsub.f32 60.0, %v1391
      %v1714 = vsub.f32 60.0, %v1398
      %v1715 = vsub.f32 60.0, %v1405
      %v1716 = vsub.f32 60.0, %v1412
      %v1717 = vsub.f32 60.0, %v1419
      %v1718 = vsub.f32 60.0, %v1426
      %v1719 = vsub.f32 60.0, %v1433
      %v1720 = vsub.f32 60.0, %v1440
      %v1721 = vsub.f32 60.0, %v1447
      %v1722 = vsub.f32 60.0, %v1454
      %v1723 = vsub.f32 60.0, %v1461
      %v1724 = vsub.f32 60.0, %v1468
      %v1725 = vsub.f32 60.0, %v1475
      %v1726 = vsub.f32 60.0, %v1482
      %v1727 = vsub.f32 60.0, %v1489
      %v1728 = vsub.f32 60.0, %v1496
      %v1729 = vsub.f32 60.0, %v1503
      %v1730 = vsub.f32 60.0, %v1510
      %v1731 = vsub.f32 60.0, %v1517
      %v1732 = vsub.f32 60.0, %v1524
      %v1733 = vsub.f32 60.0, %v1531
      %v1734 = vsub.f32 60.0, %v1538
      %v1735 = vsub.f32 60.0, %v1545
      %v1736 = vsub.f32 60.0, %v1552
      %v1737 = vsub.f32 60.0, %v1559
      %v1738 = vsub.f32 60.0, %v1566
      %v1739 = vsub.f32 60.0, %v1573
      %v1740 = vsub.f32 60.0, %v1580
      %v1741 = vsub.f32 60.0, %v1587
      %v1742 = vsub.f32 60.0, %v1594
      %v1743 = vsub.f32 60.0, %v1601
      %v1744 = vsub.f32 60.0, %v1608
      %v1745 = vsub.f32 60.0, %v1615
      %v1746 = vsub.f32 60.0, %v1622
      %v1747 = vsub.f32 60.0, %v1629
      %v1748 = vsub.f32 60.0, %v1636
      %v1749 = vsub.f32 60.0, %v1643
      %v1750 = vsub.f32 60.0, %v1650
      %v1751 = vsub.f32 60.0, %v1657
      %v1752 = vsub.f32 60.0, %v1664
      %v1753 = vsub.f32 60.0, %v1671
      %v1754 = vsub.f32 60.0, %v1678
      %v1755 = vsub.f32 60.0, %v1685
      %v1756 = vsub.f32 60.0, %v1692
      %v1757 = vmax.f32 %v1693, 0.0
      %v1758 = vmax.f32 %v1694, 0.0
      %v1759 = vmax.f32 %v1695, 0.0
      %v1760 = vmax.f32 %v1696, 0.0
      %v1761 = vmax.f32 %v1697, 0.0
      %v1762 = vmax.f32 %v1698, 0.0
      %v1763 = vmax.f32 %v1699, 0.0
      %v1764 = vmax.f32 %v1700, 0.0
      %v1765 = vmax.f32 %v1701, 0.0
      %v1766 = vmax.f32 %v1702, 0.0
      %v1767 = vmax.f32 %v1703, 0.0
      %v1768 = vmax.f32 %v1704, 0.0
      %v1769 = vmax.f32 %v1705, 0.0
      %v1770 = vmax.f32 %v1706, 0.0
      %v1771 = vmax.f32 %v1707, 0.0
      %v1772 = vmax.f32 %v1708, 0.0
      %v1773 = vmax.f32 %v1709, 0.0
      %v1774 = vmax.f32 %v1710, 0.0
      %v1775 = vmax.f32 %v1711, 0.0
      %v1776 = vmax.f32 %v1712, 0.0
      %v1777 = vmax.f32 %v1713, 0.0
      %v1778 = vmax.f32 %v1714, 0.0
      %v1779 = vmax.f32 %v1715, 0.0
      %v1780 = vmax.f32 %v1716, 0.0
      %v1781 = vmax.f32 %v1717, 0.0
      %v1782 = vmax.f32 %v1718, 0.0
      %v1783 = vmax.f32 %v1719, 0.0
      %v1784 = vmax.f32 %v1720, 0.0
      %v1785 = vmax.f32 %v1721, 0.0
      %v1786 = vmax.f32 %v1722, 0.0
      %v1787 = vmax.f32 %v1723, 0.0
      %v1788 = vmax.f32 %v1724, 0.0
      %v1789 = vmax.f32 %v1725, 0.0
      %v1790 = vmax.f32 %v1726, 0.0
      %v1791 = vmax.f32 %v1727, 0.0
      %v1792 = vmax.f32 %v1728, 0.0
      %v1793 = vmax.f32 %v1729, 0.0
      %v1794 = vmax.f32 %v1730, 0.0
      %v1795 = vmax.f32 %v1731, 0.0
      %v1796 = vmax.f32 %v1732, 0.0
      %v1797 = vmax.f32 %v1733, 0.0
      %v1798 = vmax.f32 %v1734, 0.0
      %v1799 = vmax.f32 %v1735, 0.0
      %v1800 = vmax.f32 %v1736, 0.0
      %v1801 = vmax.f32 %v1737, 0.0
      %v1802 = vmax.f32 %v1738, 0.0
      %v1803 = vmax.f32 %v1739, 0.0
      %v1804 = vmax.f32 %v1740, 0.0
      %v1805 = vmax.f32 %v1741, 0.0
      %v1806 = vmax.f32 %v1742, 0.0
      %v1807 = vmax.f32 %v1743, 0.0
      %v1808 = vmax.f32 %v1744, 0.0
      %v1809 = vmax.f32 %v1745, 0.0
      %v1810 = vmax.f32 %v1746, 0.0
      %v1811 = vmax.f32 %v1747, 0.0
      %v1812 = vmax.f32 %v1748, 0.0
      %v1813 = vmax.f32 %v1749, 0.0
      %v1814 = vmax.f32 %v1750, 0.0
      %v1815 = vmax.f32 %v1751, 0.0
      %v1816 = vmax.f32 %v1752, 0.0
      %v1817 = vmax.f32 %v1753, 0.0
      %v1818 = vmax.f32 %v1754, 0.0
      %v1819 = vmax.f32 %v1755, 0.0
      %v1820 = vmax.f32 %v1756, 0.0
      %v1821 = vmul.f32 %v1757, %v1757
      %v1822 = vmul.f32 %v1758, %v1758
      %v1823 = vmul.f32 %v1759, %v1759
      %v1824 = vmul.f32 %v1760, %v1760
      %v1825 = vmul.f32 %v1761, %v1761
      %v1826 = vmul.f32 %v1762, %v1762
      %v1827 = vmul.f32 %v1763, %v1763
      %v1828 = vmul.f32 %v1764, %v1764
      %v1829 = vmul.f32 %v1765, %v1765
      %v1830 = vmul.f32 %v1766, %v1766
      %v1831 = vmul.f32 %v1767, %v1767
      %v1832 = vmul.f32 %v1768, %v1768
      %v1833 = vmul.f32 %v1769, %v1769
      %v1834 = vmul.f32 %v1770, %v1770
      %v1835 = vmul.f32 %v1771, %v1771
      %v1836 = vmul.f32 %v1772, %v1772
      %v1837 = vmul.f32 %v1773, %v1773
      %v1838 = vmul.f32 %v1774, %v1774
      %v1839 = vmul.f32 %v1775, %v1775
      %v1840 = vmul.f32 %v1776, %v1776
      %v1841 = vmul.f32 %v1777, %v1777
      %v1842 = vmul.f32 %v1778, %v1778
      %v1843 = vmul.f32 %v1779, %v1779
      %v1844 = vmul.f32 %v1780, %v1780
      %v1845 = vmul.f32 %v1781, %v1781
      %v1846 = vmul.f32 %v1782, %v1782
      %v1847 = vmul.f32 %v1783, %v1783
      %v1848 = vmul.f32 %v1784, %v1784
      %v1849 = vmul.f32 %v1785, %v1785
      %v1850 = vmul.f32 %v1786, %v1786
      %v1851 = vmul.f32 %v1787, %v1787
      %v1852 = vmul.f32 %v1788, %v1788
      %v1853 = vmul.f32 %v1789, %v1789
      %v1854 = vmul.f32 %v1790, %v1790
      %v1855 = vmul.f32 %v1791, %v1791
      %v1856 = vmul.f32 %v1792, %v1792
      %v1857 = vmul.f32 %v1793, %v1793
      %v1858 = vmul.f32 %v1794, %v1794
      %v1859 = vmul.f32 %v1795, %v1795
      %v1860 = vmul.f32 %v1796, %v1796
      %v1861 = vmul.f32 %v1797, %v1797
      %v1862 = vmul.f32 %v1798, %v1798
      %v1863 = vmul.f32 %v1799, %v1799
      %v1864 = vmul.f32 %v1800, %v1800
      %v1865 = vmul.f32 %v1801, %v1801
      %v1866 = vmul.f32 %v1802, %v1802
      %v1867 = vmul.f32 %v1803, %v1803
      %v1868 = vmul.f32 %v1804, %v1804
      %v1869 = vmul.f32 %v1805, %v1805
      %v1870 = vmul.f32 %v1806, %v1806
      %v1871 = vmul.f32 %v1807, %v1807
      %v1872 = vmul.f32 %v1808, %v1808
      %v1873 = vmul.f32 %v1809, %v1809
      %v1874 = vmul.f32 %v1810, %v1810
      %v1875 = vmul.f32 %v1811, %v1811
      %v1876 = vmul.f32 %v1812, %v1812
      %v1877 = vmul.f32 %v1813, %v1813
      %v1878 = vmul.f32 %v1814, %v1814
      %v1879 = vmul.f32 %v1815, %v1815
      %v1880 = vmul.f32 %v1816, %v1816
      %v1881 = vmul.f32 %v1817, %v1817
      %v1882 = vmul.f32 %v1818, %v1818
      %v1883 = vmul.f32 %v1819, %v1819
      %v1884 = vmul.f32 %v1820, %v1820
      %v1885 = vlaneseq
      %v1886 = vshrl.u32 %v1885, 7
      %v1887 = vadd.s32 %v1886, 8
      %v1888 = vadd.s32 %v1886, 16
      %v1889 = vadd.s32 %v1886, 24
      %v1890 = vadd.s32 %v1886, 32
      %v1891 = vadd.s32 %v1886, 40
      %v1892 = vadd.s32 %v1886, 48
      %v1893 = vadd.s32 %v1886, 56
      %v1894 = vadd.s32 %v1886, 64
      %v1895 = vadd.s32 %v1886, 72
      %v1896 = vadd.s32 %v1886, 80
      %v1897 = vadd.s32 %v1886, 88
      %v1898 = vadd.s32 %v1886, 96
      %v1899 = vadd.s32 %v1886, 104
      %v1900 = vadd.s32 %v1886, 112
      %v1901 = vadd.s32 %v1886, 120
      %v1902 = vadd.s32 %v1886, 128
      %v1903 = vadd.s32 %v1886, 136
      %v1904 = vadd.s32 %v1886, 144
      %v1905 = vadd.s32 %v1886, 152
      %v1906 = vadd.s32 %v1886, 160
      %v1907 = vadd.s32 %v1886, 168
      %v1908 = vadd.s32 %v1886, 176
      %v1909 = vadd.s32 %v1886, 184
      %v1910 = vadd.s32 %v1886, 192
      %v1911 = vadd.s32 %v1886, 200
      %v1912 = vadd.s32 %v1886, 208
      %v1913 = vadd.s32 %v1886, 216
      %v1914 = vadd.s32 %v1886, 224
      %v1915 = vadd.s32 %v1886, 232
      %v1916 = vadd.s32 %v1886, 240
      %v1917 = vadd.s32 %v1886, 248
      %v1918 = vstv %s294
      %v1919 = vadd.s32 %v1918, %v1886
      %v1920 = vadd.s32 %v1918, %v1887
      %v1921 = vadd.s32 %v1918, %v1888
      %v1922 = vadd.s32 %v1918, %v1889
      %v1923 = vadd.s32 %v1918, %v1890
      %v1924 = vadd.s32 %v1918, %v1891
      %v1925 = vadd.s32 %v1918, %v1892
      %v1926 = vadd.s32 %v1918, %v1893
      %v1927 = vadd.s32 %v1918, %v1894
      %v1928 = vadd.s32 %v1918, %v1895
      %v1929 = vadd.s32 %v1918, %v1896
      %v1930 = vadd.s32 %v1918, %v1897
      %v1931 = vadd.s32 %v1918, %v1898
      %v1932 = vadd.s32 %v1918, %v1899
      %v1933 = vadd.s32 %v1918, %v1900
      %v1934 = vadd.s32 %v1918, %v1901
      %v1935 = vadd.s32 %v1918, %v1902
      %v1936 = vadd.s32 %v1918, %v1903
      %v1937 = vadd.s32 %v1918, %v1904
      %v1938 = vadd.s32 %v1918, %v1905
      %v1939 = vadd.s32 %v1918, %v1906
      %v1940 = vadd.s32 %v1918, %v1907
      %v1941 = vadd.s32 %v1918, %v1908
      %v1942 = vadd.s32 %v1918, %v1909
      %v1943 = vadd.s32 %v1918, %v1910
      %v1944 = vadd.s32 %v1918, %v1911
      %v1945 = vadd.s32 %v1918, %v1912
      %v1946 = vadd.s32 %v1918, %v1913
      %v1947 = vadd.s32 %v1918, %v1914
      %v1948 = vadd.s32 %v1918, %v1915
      %v1949 = vadd.s32 %v1918, %v1916
      %v1950 = vadd.s32 %v1918, %v1917
      %v1951 = vstv %s42
      %vm1952 = vcmp.lt.s32.totalorder %v1919, %v1951
      %vm1953 = vcmp.lt.s32.totalorder %v1920, %v1951
      %vm1954 = vcmp.lt.s32.totalorder %v1921, %v1951
      %vm1955 = vcmp.lt.s32.totalorder %v1922, %v1951
      %vm1956 = vcmp.lt.s32.totalorder %v1923, %v1951
      %vm1957 = vcmp.lt.s32.totalorder %v1924, %v1951
      %vm1958 = vcmp.lt.s32.totalorder %v1925, %v1951
      %vm1959 = vcmp.lt.s32.totalorder %v1926, %v1951
      %vm1960 = vcmp.lt.s32.totalorder %v1927, %v1951
      %vm1961 = vcmp.lt.s32.totalorder %v1928, %v1951
      %vm1962 = vcmp.lt.s32.totalorder %v1929, %v1951
      %vm1963 = vcmp.lt.s32.totalorder %v1930, %v1951
      %vm1964 = vcmp.lt.s32.totalorder %v1931, %v1951
      %vm1965 = vcmp.lt.s32.totalorder %v1932, %v1951
      %vm1966 = vcmp.lt.s32.totalorder %v1933, %v1951
      %vm1967 = vcmp.lt.s32.totalorder %v1934, %v1951
      %vm1968 = vcmp.lt.s32.totalorder %v1935, %v1951
      %vm1969 = vcmp.lt.s32.totalorder %v1936, %v1951
      %vm1970 = vcmp.lt.s32.totalorder %v1937, %v1951
      %vm1971 = vcmp.lt.s32.totalorder %v1938, %v1951
      %vm1972 = vcmp.lt.s32.totalorder %v1939, %v1951
      %vm1973 = vcmp.lt.s32.totalorder %v1940, %v1951
      %vm1974 = vcmp.lt.s32.totalorder %v1941, %v1951
      %vm1975 = vcmp.lt.s32.totalorder %v1942, %v1951
      %vm1976 = vcmp.lt.s32.totalorder %v1943, %v1951
      %vm1977 = vcmp.lt.s32.totalorder %v1944, %v1951
      %vm1978 = vcmp.lt.s32.totalorder %v1945, %v1951
      %vm1979 = vcmp.lt.s32.totalorder %v1946, %v1951
      %vm1980 = vcmp.lt.s32.totalorder %v1947, %v1951
      %vm1981 = vcmp.lt.s32.totalorder %v1948, %v1951
      %vm1982 = vcmp.lt.s32.totalorder %v1949, %v1951
      %vm1983 = vcmp.lt.s32.totalorder %v1950, %v1951
      %v1984 = vsel %vm1952, 1, 0
      %v1985 = vsel %vm1953, 1, 0
      %v1986 = vsel %vm1954, 1, 0
      %v1987 = vsel %vm1955, 1, 0
      %v1988 = vsel %vm1956, 1, 0
      %v1989 = vsel %vm1957, 1, 0
      %v1990 = vsel %vm1958, 1, 0
      %v1991 = vsel %vm1959, 1, 0
      %v1992 = vsel %vm1960, 1, 0
      %v1993 = vsel %vm1961, 1, 0
      %v1994 = vsel %vm1962, 1, 0
      %v1995 = vsel %vm1963, 1, 0
      %v1996 = vsel %vm1964, 1, 0
      %v1997 = vsel %vm1965, 1, 0
      %v1998 = vsel %vm1966, 1, 0
      %v1999 = vsel %vm1967, 1, 0
      %v2000 = vsel %vm1968, 1, 0
      %v2001 = vsel %vm1969, 1, 0
      %v2002 = vsel %vm1970, 1, 0
      %v2003 = vsel %vm1971, 1, 0
      %v2004 = vsel %vm1972, 1, 0
      %v2005 = vsel %vm1973, 1, 0
      %v2006 = vsel %vm1974, 1, 0
      %v2007 = vsel %vm1975, 1, 0
      %v2008 = vsel %vm1976, 1, 0
      %v2009 = vsel %vm1977, 1, 0
      %v2010 = vsel %vm1978, 1, 0
      %v2011 = vsel %vm1979, 1, 0
      %v2012 = vsel %vm1980, 1, 0
      %v2013 = vsel %vm1981, 1, 0
      %v2014 = vsel %vm1982, 1, 0
      %v2015 = vsel %vm1983, 1, 0
      %v2016 = vcvt.s32.f32 %v1984
      %v2017 = vcvt.s32.f32 %v1985
      %v2018 = vcvt.s32.f32 %v1986
      %v2019 = vcvt.s32.f32 %v1987
      %v2020 = vcvt.s32.f32 %v1988
      %v2021 = vcvt.s32.f32 %v1989
      %v2022 = vcvt.s32.f32 %v1990
      %v2023 = vcvt.s32.f32 %v1991
      %v2024 = vcvt.s32.f32 %v1992
      %v2025 = vcvt.s32.f32 %v1993
      %v2026 = vcvt.s32.f32 %v1994
      %v2027 = vcvt.s32.f32 %v1995
      %v2028 = vcvt.s32.f32 %v1996
      %v2029 = vcvt.s32.f32 %v1997
      %v2030 = vcvt.s32.f32 %v1998
      %v2031 = vcvt.s32.f32 %v1999
      %v2032 = vcvt.s32.f32 %v2000
      %v2033 = vcvt.s32.f32 %v2001
      %v2034 = vcvt.s32.f32 %v2002
      %v2035 = vcvt.s32.f32 %v2003
      %v2036 = vcvt.s32.f32 %v2004
      %v2037 = vcvt.s32.f32 %v2005
      %v2038 = vcvt.s32.f32 %v2006
      %v2039 = vcvt.s32.f32 %v2007
      %v2040 = vcvt.s32.f32 %v2008
      %v2041 = vcvt.s32.f32 %v2009
      %v2042 = vcvt.s32.f32 %v2010
      %v2043 = vcvt.s32.f32 %v2011
      %v2044 = vcvt.s32.f32 %v2012
      %v2045 = vcvt.s32.f32 %v2013
      %v2046 = vcvt.s32.f32 %v2014
      %v2047 = vcvt.s32.f32 %v2015
      %v2048 = vlaneseq
      %v2049 = vand.u32 %v2048, 127
      %v2050 = vadd.s32 %v2049, 128
      %vm2051 = vcmp.lt.s32.totalorder %v2049, %v1951
      %vm2052 = vcmp.lt.s32.totalorder %v2050, %v1951
      %v2053 = vsel %vm2051, 1, 0
      %v2054 = vsel %vm2052, 1, 0
      %v2055 = vcvt.s32.f32 %v2053
      %v2056 = vcvt.s32.f32 %v2054
      %s2057 = sld [smem:[#allocation2]]
      %v2058 = vmul.f32 %v1821, %v2016
      %v2059 = vmul.f32 %v1822, %v2016
      %v2060 = vmul.f32 %v1823, %v2017
      %v2061 = vmul.f32 %v1824, %v2017
      %v2062 = vmul.f32 %v1825, %v2018
      %v2063 = vmul.f32 %v1826, %v2018
      %v2064 = vmul.f32 %v1827, %v2019
      %v2065 = vmul.f32 %v1828, %v2019
      %v2066 = vmul.f32 %v1829, %v2020
      %v2067 = vmul.f32 %v1830, %v2020
      %v2068 = vmul.f32 %v1831, %v2021
      %v2069 = vmul.f32 %v1832, %v2021
      %v2070 = vmul.f32 %v1833, %v2022
      %v2071 = vmul.f32 %v1834, %v2022
      %v2072 = vmul.f32 %v1835, %v2023
      %v2073 = vmul.f32 %v1836, %v2023
      %v2074 = vmul.f32 %v1837, %v2024
      %v2075 = vmul.f32 %v1838, %v2024
      %v2076 = vmul.f32 %v1839, %v2025
      %v2077 = vmul.f32 %v1840, %v2025
      %v2078 = vmul.f32 %v1841, %v2026
      %v2079 = vmul.f32 %v1842, %v2026
      %v2080 = vmul.f32 %v1843, %v2027
      %v2081 = vmul.f32 %v1844, %v2027
      %v2082 = vmul.f32 %v1845, %v2028
      %v2083 = vmul.f32 %v1846, %v2028
      %v2084 = vmul.f32 %v1847, %v2029
      %v2085 = vmul.f32 %v1848, %v2029
      %v2086 = vmul.f32 %v1849, %v2030
      %v2087 = vmul.f32 %v1850, %v2030
      %v2088 = vmul.f32 %v1851, %v2031
      %v2089 = vmul.f32 %v1852, %v2031
      %v2090 = vmul.f32 %v1853, %v2032
      %v2091 = vmul.f32 %v1854, %v2032
      %v2092 = vmul.f32 %v1855, %v2033
      %v2093 = vmul.f32 %v1856, %v2033
      %v2094 = vmul.f32 %v1857, %v2034
      %v2095 = vmul.f32 %v1858, %v2034
      %v2096 = vmul.f32 %v1859, %v2035
      %v2097 = vmul.f32 %v1860, %v2035
      %v2098 = vmul.f32 %v1861, %v2036
      %v2099 = vmul.f32 %v1862, %v2036
      %v2100 = vmul.f32 %v1863, %v2037
      %v2101 = vmul.f32 %v1864, %v2037
      %v2102 = vmul.f32 %v1865, %v2038
      %v2103 = vmul.f32 %v1866, %v2038
      %v2104 = vmul.f32 %v1867, %v2039
      %v2105 = vmul.f32 %v1868, %v2039
      %v2106 = vmul.f32 %v1869, %v2040
      %v2107 = vmul.f32 %v1870, %v2040
      %v2108 = vmul.f32 %v1871, %v2041
      %v2109 = vmul.f32 %v1872, %v2041
      %v2110 = vmul.f32 %v1873, %v2042
      %v2111 = vmul.f32 %v1874, %v2042
      %v2112 = vmul.f32 %v1875, %v2043
      %v2113 = vmul.f32 %v1876, %v2043
      %v2114 = vmul.f32 %v1877, %v2044
      %v2115 = vmul.f32 %v1878, %v2044
      %v2116 = vmul.f32 %v1879, %v2045
      %v2117 = vmul.f32 %v1880, %v2045
      %v2118 = vmul.f32 %v1881, %v2046
      %v2119 = vmul.f32 %v1882, %v2046
      %v2120 = vmul.f32 %v1883, %v2047
      %v2121 = vmul.f32 %v1884, %v2047
      %v2122 = vmul.f32 %v2058, %v2055
      %v2123 = vmul.f32 %v2059, %v2056
      %v2124 = vmul.f32 %v2060, %v2055
      %v2125 = vmul.f32 %v2061, %v2056
      %v2126 = vmul.f32 %v2062, %v2055
      %v2127 = vmul.f32 %v2063, %v2056
      %v2128 = vmul.f32 %v2064, %v2055
      %v2129 = vmul.f32 %v2065, %v2056
      %v2130 = vmul.f32 %v2066, %v2055
      %v2131 = vmul.f32 %v2067, %v2056
      %v2132 = vmul.f32 %v2068, %v2055
      %v2133 = vmul.f32 %v2069, %v2056
      %v2134 = vmul.f32 %v2070, %v2055
      %v2135 = vmul.f32 %v2071, %v2056
      %v2136 = vmul.f32 %v2072, %v2055
      %v2137 = vmul.f32 %v2073, %v2056
      %v2138 = vmul.f32 %v2074, %v2055
      %v2139 = vmul.f32 %v2075, %v2056
      %v2140 = vmul.f32 %v2076, %v2055
      %v2141 = vmul.f32 %v2077, %v2056
      %v2142 = vmul.f32 %v2078, %v2055
      %v2143 = vmul.f32 %v2079, %v2056
      %v2144 = vmul.f32 %v2080, %v2055
      %v2145 = vmul.f32 %v2081, %v2056
      %v2146 = vmul.f32 %v2082, %v2055
      %v2147 = vmul.f32 %v2083, %v2056
      %v2148 = vmul.f32 %v2084, %v2055
      %v2149 = vmul.f32 %v2085, %v2056
      %v2150 = vmul.f32 %v2086, %v2055
      %v2151 = vmul.f32 %v2087, %v2056
      %v2152 = vmul.f32 %v2088, %v2055
      %v2153 = vmul.f32 %v2089, %v2056
      %v2154 = vmul.f32 %v2090, %v2055
      %v2155 = vmul.f32 %v2091, %v2056
      %v2156 = vmul.f32 %v2092, %v2055
      %v2157 = vmul.f32 %v2093, %v2056
      %v2158 = vmul.f32 %v2094, %v2055
      %v2159 = vmul.f32 %v2095, %v2056
      %v2160 = vmul.f32 %v2096, %v2055
      %v2161 = vmul.f32 %v2097, %v2056
      %v2162 = vmul.f32 %v2098, %v2055
      %v2163 = vmul.f32 %v2099, %v2056
      %v2164 = vmul.f32 %v2100, %v2055
      %v2165 = vmul.f32 %v2101, %v2056
      %v2166 = vmul.f32 %v2102, %v2055
      %v2167 = vmul.f32 %v2103, %v2056
      %v2168 = vmul.f32 %v2104, %v2055
      %v2169 = vmul.f32 %v2105, %v2056
      %v2170 = vmul.f32 %v2106, %v2055
      %v2171 = vmul.f32 %v2107, %v2056
      %v2172 = vmul.f32 %v2108, %v2055
      %v2173 = vmul.f32 %v2109, %v2056
      %v2174 = vmul.f32 %v2110, %v2055
      %v2175 = vmul.f32 %v2111, %v2056
      %v2176 = vmul.f32 %v2112, %v2055
      %v2177 = vmul.f32 %v2113, %v2056
      %v2178 = vmul.f32 %v2114, %v2055
      %v2179 = vmul.f32 %v2115, %v2056
      %v2180 = vmul.f32 %v2116, %v2055
      %v2181 = vmul.f32 %v2117, %v2056
      %v2182 = vmul.f32 %v2118, %v2055
      %v2183 = vmul.f32 %v2119, %v2056
      %v2184 = vmul.f32 %v2120, %v2055
      %v2185 = vmul.f32 %v2121, %v2056
      %v2186 = vadd.f32 %v2122, %v2123
      %v2187 = vadd.f32 %v2186, %v2124
      %v2188 = vadd.f32 %v2187, %v2125
      %v2189 = vadd.f32 %v2188, %v2126
      %v2190 = vadd.f32 %v2189, %v2127
      %v2191 = vadd.f32 %v2190, %v2128
      %v2192 = vadd.f32 %v2191, %v2129
      %v2193 = vadd.f32 %v2192, %v2130
      %v2194 = vadd.f32 %v2193, %v2131
      %v2195 = vadd.f32 %v2194, %v2132
      %v2196 = vadd.f32 %v2195, %v2133
      %v2197 = vadd.f32 %v2196, %v2134
      %v2198 = vadd.f32 %v2197, %v2135
      %v2199 = vadd.f32 %v2198, %v2136
      %v2200 = vadd.f32 %v2199, %v2137
      %v2201 = vadd.f32 %v2200, %v2138
      %v2202 = vadd.f32 %v2201, %v2139
      %v2203 = vadd.f32 %v2202, %v2140
      %v2204 = vadd.f32 %v2203, %v2141
      %v2205 = vadd.f32 %v2204, %v2142
      %v2206 = vadd.f32 %v2205, %v2143
      %v2207 = vadd.f32 %v2206, %v2144
      %v2208 = vadd.f32 %v2207, %v2145
      %v2209 = vadd.f32 %v2208, %v2146
      %v2210 = vadd.f32 %v2209, %v2147
      %v2211 = vadd.f32 %v2210, %v2148
      %v2212 = vadd.f32 %v2211, %v2149
      %v2213 = vadd.f32 %v2212, %v2150
      %v2214 = vadd.f32 %v2213, %v2151
      %v2215 = vadd.f32 %v2214, %v2152
      %v2216 = vadd.f32 %v2215, %v2153
      %v2217 = vadd.f32 %v2216, %v2154
      %v2218 = vadd.f32 %v2217, %v2155
      %v2219 = vadd.f32 %v2218, %v2156
      %v2220 = vadd.f32 %v2219, %v2157
      %v2221 = vadd.f32 %v2220, %v2158
      %v2222 = vadd.f32 %v2221, %v2159
      %v2223 = vadd.f32 %v2222, %v2160
      %v2224 = vadd.f32 %v2223, %v2161
      %v2225 = vadd.f32 %v2224, %v2162
      %v2226 = vadd.f32 %v2225, %v2163
      %v2227 = vadd.f32 %v2226, %v2164
      %v2228 = vadd.f32 %v2227, %v2165
      %v2229 = vadd.f32 %v2228, %v2166
      %v2230 = vadd.f32 %v2229, %v2167
      %v2231 = vadd.f32 %v2230, %v2168
      %v2232 = vadd.f32 %v2231, %v2169
      %v2233 = vadd.f32 %v2232, %v2170
      %v2234 = vadd.f32 %v2233, %v2171
      %v2235 = vadd.f32 %v2234, %v2172
      %v2236 = vadd.f32 %v2235, %v2173
      %v2237 = vadd.f32 %v2236, %v2174
      %v2238 = vadd.f32 %v2237, %v2175
      %v2239 = vadd.f32 %v2238, %v2176
      %v2240 = vadd.f32 %v2239, %v2177
      %v2241 = vadd.f32 %v2240, %v2178
      %v2242 = vadd.f32 %v2241, %v2179
      %v2243 = vadd.f32 %v2242, %v2180
      %v2244 = vadd.f32 %v2243, %v2181
      %v2245 = vadd.f32 %v2244, %v2182
      %v2246 = vadd.f32 %v2245, %v2183
      %v2247 = vadd.f32 %v2246, %v2184
      %v2248 = vadd.f32 %v2247, %v2185
      %2249 = vadd.xlane.f32.xlu0 %v2248
      %v2250 = vpop.xlane.xlu0 %2249
      %v2251 = vrot.slane %v2250, 4
      %v2252 = vadd.f32 %v2250, %v2251
      %v2253 = vrot.slane %v2252, 2
      %v2254 = vadd.f32 %v2252, %v2253
      %v2255 = vrot.slane %v2254, 1
      %v2256 = vadd.f32 %v2254, %v2255
      %s2257 = vtos %v2256
      %s2258 = sadd.f32 %s2057, %s2257
      %s2259 = scalar_lea.smem [#allocation2], 0
      %2260 = sst [smem:[%s2259]] %s2258
    $region53: #{tpu_custom_call.1} parent=1 // pred_fallthru
      _
    // Predicated region
    $region54: #{tpu_custom_call.1} parent=1 // pred_check
      %p2261 = pneg %p43
    $region55: #{tpu_custom_call.1} parent=1 // pred_check_branch
      %2263 = sbr.rel (%p2261) target = $region57
    $region56: #{tpu_custom_call.1} parent=1 // pred_region
      %s2264 = scvt.s32.f32 %s42
      %s2265 = sld [smem:[#allocation2]]
      %s2266 = smul.f32 %s2264, 3600.0
      %s2267 = ssub.f32 %s2265, %s2266
      %s2268 = smul.f32 %s2267, 0.5
      %s2269 = ssub.f32 %s2264, 1.0
      %s2270 = smul.f32 %s2264, %s2269
      %s2271 = smul.f32 %s2270, 0.5
      %s2272 = smax.f32 %s2271, 1.0
      %p2273 = scmp.ge.s32.totalorder %s42, 2
      %v2274 = vstv %s2272
      %v2275 = vrcp.pop %v2274
      %s2276 = vtos %v2275
      %s2277 = smul.f32 %s2268, %s2276
      %s2278 = scalar_select %p2273, %s2277, 0.0
      %s2279 = scalar_lea.smem [#allocation5], 4
      %2280 = sst [smem:[%s2279]] %s2278
    $region57: #{tpu_custom_call.1} parent=1 // pred_fallthru
      _
    // Predicated region
    $region58: #{tpu_custom_call.1} parent=1 // pred_check
      _
    $region59: #{tpu_custom_call.1} parent=1 // pred_check_branch
      %2282 = sbr.rel (0) target = $region61
    $region60: #{tpu_custom_call.1} parent=1 // pred_region
      %s2284 = ssub.s32 16, 16
      %2285 = vsyncadd [#allocation6], %s2284
      %2288 = dma.smem_to_hbm [#allocation5], 16, %s11, [#allocation6]
    $region61: #{tpu_custom_call.1} parent=1 // pred_fallthru
      _
    // Predicated region
    $region62: #{tpu_custom_call.1} parent=1 // pred_check
      _
    $region63: #{tpu_custom_call.1} parent=1 // pred_check_branch
      %2290 = sbr.rel (0) target = $region65
    $region64: #{tpu_custom_call.1} parent=1 // pred_region
      %2291 = dma.done [#allocation6], 16
    $region65: #{tpu_custom_call.1} parent=1 // pred_fallthru
      _
    %2292 = sfence
    %2293 = vsyncpa [#allocation6], 1

</llo_original>
